<compile_context>
chip_gen: v6e
topology: v6e:2x2x1
jax: 0.10.0
libtpu: 0.0.40
codegen_flags: <defaults>
</compile_context>

<pallas_src>
import functools

import jax
import jax.numpy as jnp
from jax import lax
from jax.experimental import pallas as pl
from jax.experimental.pallas import tpu as pltpu


# ----------------------------------------------------------------------------
# Kernel
# ----------------------------------------------------------------------------
def _audio_branch_kernel(x_ref, w1_ref, b1_ref, w2_ref, b2_ref, w3_ref, b3_ref,
                         wf_ref, bf_ref, o_ref, x_sc, h1_sc, h2_sc,
                         *, tb, l, l1, l2, l3, m1, m2, m3, s0):
    f32 = jnp.float32
    bf16 = jnp.bfloat16

    # ---- Stage 0: repack the lane-dense (TB, L) input into a batch-stacked
    # column scratch: x_sc[b*S0 + p, 0] = x[b, p].  One XLU transpose; after
    # this every stride-2 tap gather is a single strided sublane read.
    x_sc[...] = jnp.zeros(x_sc.shape, f32)              # deterministic padding
    xt = x_ref[...].astype(f32).T                        # (L, TB)
    for bi in range(tb):
        x_sc[pl.ds(bi * s0, l), :] = xt[:, bi:bi + 1]

    # Zero the small slack tails so over-read rows stay finite (they only ever
    # feed padded output rows that are never read as valid data).
    h1_sc[pl.ds(tb * m1, 8), :] = jnp.zeros((8, h1_sc.shape[1]), f32)
    h2_sc[pl.ds(tb * m2, 8), :] = jnp.zeros((8, h2_sc.shape[1]), f32)

    # ---- conv1 (Cin = 1): 5 strided tap reads + VPU broadcast-FMA.
    # M = TB*M1 rows (batch-stacked).
    w1 = w1_ref[...]                                      # (5, 64) f32
    acc1 = jnp.zeros((tb * m1, w1.shape[1]), f32)
    for k in range(5):
        xk = x_sc[pl.ds(k, tb * m1, stride=2), :]         # (TB*M1, 1)
        acc1 = acc1 + xk * w1[k:k + 1, :]
    h1 = jnp.maximum(acc1 + b1_ref[...], 0.0)             # (TB*M1, 64) f32
    h1_sc[pl.ds(0, tb * m1), :] = h1

    # ---- conv2: 5 strided reads -> lane-concat im2col (TB*M2, 320) -> one
    # bf16 MXU matmul with f32 accumulation.
    taps2 = [h1_sc[pl.ds(k, tb * m2, stride=2), :] for k in range(5)]
    p2 = jnp.concatenate(taps2, axis=-1).astype(bf16)     # (TB*M2, 320)
    h2 = jnp.dot(p2, w2_ref[...], preferred_element_type=f32)
    h2 = jnp.maximum(h2 + b2_ref[...], 0.0)               # (TB*M2, 128) f32
    h2_sc[pl.ds(0, tb * m2), :] = h2

    # ---- conv3: same, K = 640.
    taps3 = [h2_sc[pl.ds(k, tb * m3, stride=2), :] for k in range(5)]
    p3 = jnp.concatenate(taps3, axis=-1).astype(bf16)     # (TB*M3, 640)
    h3 = jnp.dot(p3, w3_ref[...], preferred_element_type=f32)
    h3 = jnp.maximum(h3 + b3_ref[...], 0.0)               # (TB*M3, 256) f32

    # ---- AdaptiveAvgPool1d(1) over the L3 valid rows of each batch block,
    # then one (TB, 256) x (256, Npad) FC matmul for the whole tile.
    parts = []
    for bi in range(tb):
        blk = h3[bi * m3: bi * m3 + l3, :]                # valid rows only
        parts.append(jnp.sum(blk, axis=0, keepdims=True))
    pooled = jnp.concatenate(parts, axis=0) * (1.0 / l3)  # (TB, 256) f32
    out = jnp.dot(pooled.astype(bf16), wf_ref[...],
                  preferred_element_type=f32) + bf_ref[...]
    o_ref[...] = out.astype(o_ref.dtype)                  # (TB, Npad) lane-dense


# ----------------------------------------------------------------------------
# Wrapper
# ----------------------------------------------------------------------------
def _const_index_map(rank):
    zeros = (0,) * rank
    return lambda i: zeros


def _resident_spec(arr):
    """Full-array block, constant index map; single-buffered when supported."""
    idx = _const_index_map(arr.ndim)
    try:
        return pl.BlockSpec(arr.shape, idx, pipeline_mode=pl.Buffered(1))
    except TypeError:   # older jax without pipeline_mode kwarg
        return pl.BlockSpec(arr.shape, idx)


def audio_branch_forward(x_ncl, params, *, output_dim=200, tile_b=8):
    """x_ncl: (B, 1, L) float32 (PyTorch Conv1d layout). Returns (B, output_dim)."""
    b, cin, l = x_ncl.shape
    assert cin == 1, "AudioBranch expects a single input channel"
    l1 = (l - 5) // 2 + 1
    l2 = (l1 - 5) // 2 + 1
    l3 = (l2 - 5) // 2 + 1
    assert l3 >= 1, "input too short for three stride-2 K=5 convs"

    cdiv = lambda a, d: -(-a // d)
    rup = lambda a, m: cdiv(a, m) * m

    # Per-batch padded row counts with M1 = 2*M2 = 4*M3 and S0 = 2*M1 so each
    # batch-stacked tap gather is one strided read and each store is aligned.
    m3 = rup(max(l3, cdiv(l2, 2), cdiv(l1, 4), cdiv(l, 8)), 8)
    m2, m1, s0 = 2 * m3, 4 * m3, 8 * m3

    # Batch tile: either the whole (small) batch, or a multiple of 8.
    tb = b if b <= tile_b else max(8, (tile_b // 8) * 8)
    b_pad = rup(b, tb)

    x = x_ncl.reshape(b, l)                         # Cin==1 -> free reshape
    if b_pad != b:
        x = jnp.pad(x, ((0, b_pad - b), (0, 0)))

    c1 = params["w1"].shape[1]
    c2 = params["w2"].shape[1]
    c3 = params["w3"].shape[1]
    n_pad = params["wf"].shape[1]

    kernel = functools.partial(
        _audio_branch_kernel, tb=tb, l=l, l1=l1, l2=l2, l3=l3,
        m1=m1, m2=m2, m3=m3, s0=s0)

    flops = 2 * b_pad * (l1 * 5 * 1 * c1 + l2 * 5 * c1 * c2
                         + l3 * 5 * c2 * c3 + c3 * n_pad)
    bytes_accessed = (b_pad * l * 4
                      + sum(int(v.size) * v.dtype.itemsize
                            for v in params.values())
                      + b_pad * n_pad * 4)

    out = pl.pallas_call(
        kernel,
        out_shape=jax.ShapeDtypeStruct((b_pad, n_pad), jnp.float32),
        grid=(b_pad // tb,),
        in_specs=[
            pl.BlockSpec((tb, l), lambda i: (i, 0)),          # lane-dense input
            _resident_spec(params["w1"]), _resident_spec(params["b1"]),
            _resident_spec(params["w2"]), _resident_spec(params["b2"]),
            _resident_spec(params["w3"]), _resident_spec(params["b3"]),
            _resident_spec(params["wf"]), _resident_spec(params["bf"]),
        ],
        out_specs=pl.BlockSpec((tb, n_pad), lambda i: (i, 0)),
        scratch_shapes=[
            pltpu.VMEM((tb * s0 + 8, 1), jnp.float32),        # waveform columns
            pltpu.VMEM((tb * m1 + 8, c1), jnp.float32),       # conv1 activations
            pltpu.VMEM((tb * m2 + 8, c2), jnp.float32),       # conv2 activations
        ],
        compiler_params=pltpu.CompilerParams(
            dimension_semantics=("parallel",),                 # v7x: 2 TCs split tiles
            vmem_limit_bytes=32 * 1024 * 1024,
        ),
        cost_estimate=pl.CostEstimate(flops=int(flops), transcendentals=0,
                                      bytes_accessed=int(bytes_accessed)),
    )(x, params["w1"], params["b1"], params["w2"], params["b2"],
      params["w3"], params["b3"], params["wf"], params["bf"])

    return out[:b, :output_dim]


# ----------------------------------------------------------------------------
# Parameters: PyTorch-layout init + one-time repack into kernel layout
# ----------------------------------------------------------------------------
def init_params(key, output_dim=200):
    """PyTorch-layout parameters with PyTorch-style uniform init."""
    def uni(k, shape, fan_in):
        bound = 1.0 / jnp.sqrt(fan_in)
        return jax.random.uniform(k, shape, jnp.float32, -bound, bound)

    ks = jax.random.split(key, 8)
    return {
        "w1": uni(ks[0], (64, 1, 5), 1 * 5),
        "b1": uni(ks[1], (64,), 1 * 5),
        "w2": uni(ks[2], (128, 64, 5), 64 * 5),
        "b2": uni(ks[3], (128,), 64 * 5),
        "w3": uni(ks[4], (256, 128, 5), 128 * 5),
        "b3": uni(ks[5], (256,), 128 * 5),
        "wf": uni(ks[6], (output_dim, 256), 256),
        "bf": uni(ks[7], (output_dim,), 256),
    }


def prepare_params(pt_params, *, lane=128, matmul_dtype=jnp.bfloat16):
    """One-time repack:
       * conv weights as im2col matrices (5*Cin, Cout), row index = k*Cin + cin
         (matches the kernel's lane-concat tap order); conv2/conv3 stored bf16.
       * fc weight (256, Npad) zero-padded to a multiple of 128 lanes, bf16.
       * biases as (1, C) f32 rows."""
    def im2col_weight(w):                      # (Cout, Cin, K) -> (K*Cin, Cout)
        cout, cin, k = w.shape
        return jnp.transpose(w, (2, 1, 0)).reshape(k * cin, cout)

    wf, bf = pt_params["wf"], pt_params["bf"]
    out_dim, feat = wf.shape
    n_pad = ((out_dim + lane - 1) // lane) * lane
    wf_pad = jnp.zeros((feat, n_pad), jnp.float32).at[:, :out_dim].set(wf.T)
    bf_pad = jnp.zeros((1, n_pad), jnp.float32).at[:, :out_dim].set(bf)
    return {
        "w1": im2col_weight(pt_params["w1"]).astype(jnp.float32),   # (5, 64), VPU
        "b1": pt_params["b1"].reshape(1, -1).astype(jnp.float32),
        "w2": im2col_weight(pt_params["w2"]).astype(matmul_dtype),  # (320, 128)
        "b2": pt_params["b2"].reshape(1, -1).astype(jnp.float32),
        "w3": im2col_weight(pt_params["w3"]).astype(matmul_dtype),  # (640, 256)
        "b3": pt_params["b3"].reshape(1, -1).astype(jnp.float32),
        "wf": wf_pad.astype(matmul_dtype),                          # (256, Npad)
        "bf": bf_pad,                                               # (1, Npad) f32
    }


# ----------------------------------------------------------------------------
# Pure-JAX reference (sanity check)
# ----------------------------------------------------------------------------
def reference_forward(x_ncl, pt_params):
    def conv1d(x, w, b, stride):
        y = lax.conv_general_dilated(
            x, w, window_strides=(stride,), padding="VALID",
            dimension_numbers=("NCH", "OIH", "NCH"))
        return jax.nn.relu(y + b[None, :, None])

    h = conv1d(x_ncl, pt_params["w1"], pt_params["b1"], 2)
    h = conv1d(h, pt_params["w2"], pt_params["b2"], 2)
    h = conv1d(h, pt_params["w3"], pt_params["b3"], 2)
    pooled = jnp.mean(h, axis=-1)                 # AdaptiveAvgPool1d(1) + flatten
    return pooled @ pt_params["wf"].T + pt_params["bf"]


if __name__ == "__main__":
    key = jax.random.PRNGKey(0)
    k_x, k_p = jax.random.split(key)

    B, CIN, L = 2, 1, 128                          # small audio clip
    OUT_DIM = 200
    x = jax.random.normal(k_x, (B, CIN, L), dtype=jnp.float32)

    pt_params = init_params(k_p, output_dim=OUT_DIM)
    params = prepare_params(pt_params)             # kernel layout, done once

    fwd = jax.jit(functools.partial(audio_branch_forward, output_dim=OUT_DIM))
    out = jax.block_until_ready(fwd(x, params))

    ref = reference_forward(x, pt_params)
    assert out.shape == (B, OUT_DIM), out.shape
    max_err = float(jnp.max(jnp.abs(out - ref)))
    # bf16 MXU operands with f32 accumulation: ~1e-2-level agreement expected.
    assert jnp.allclose(out, ref, rtol=5e-2, atol=5e-2), max_err

    print("KERNEL_OK")
</pallas_src>

<mosaic_0001>
module attributes {stable_mosaic.version = 11 : i64} {
  func.func @_audio_branch_kernel(%arg0: i32, %arg1: memref<2x128xf32, #tpu.memory_space<vmem>>, %arg2: memref<5x64xf32, #tpu.memory_space<vmem>>, %arg3: memref<1x64xf32, #tpu.memory_space<vmem>>, %arg4: memref<320x128xbf16, #tpu.memory_space<vmem>>, %arg5: memref<1x128xf32, #tpu.memory_space<vmem>>, %arg6: memref<640x256xbf16, #tpu.memory_space<vmem>>, %arg7: memref<1x256xf32, #tpu.memory_space<vmem>>, %arg8: memref<256x256xbf16, #tpu.memory_space<vmem>>, %arg9: memref<1x256xf32, #tpu.memory_space<vmem>>, %arg10: memref<2x256xf32, #tpu.memory_space<vmem>>, %arg11: memref<264x1xf32, #tpu.memory_space<vmem>>, %arg12: memref<136x64xf32, #tpu.memory_space<vmem>>, %arg13: memref<72x128xf32, #tpu.memory_space<vmem>>) attributes {dimension_semantics = [#tpu.dimension_semantics<parallel>], iteration_bounds = array<i64: 1>, scalar_prefetch = 0 : i64, scratch_operands = 3 : i64, tpu.core_type = #tpu.core_type<tc>, window_params = [{transform_indices = @transform_0, window_bounds = array<i64: 2, 128>}, {pipeline_mode = #tpu.pipeline_mode<synchronous>, transform_indices = @transform_1, window_bounds = array<i64: 5, 64>}, {pipeline_mode = #tpu.pipeline_mode<synchronous>, transform_indices = @transform_2, window_bounds = array<i64: 1, 64>}, {pipeline_mode = #tpu.pipeline_mode<synchronous>, transform_indices = @transform_3, window_bounds = array<i64: 320, 128>}, {pipeline_mode = #tpu.pipeline_mode<synchronous>, transform_indices = @transform_4, window_bounds = array<i64: 1, 128>}, {pipeline_mode = #tpu.pipeline_mode<synchronous>, transform_indices = @transform_5, window_bounds = array<i64: 640, 256>}, {pipeline_mode = #tpu.pipeline_mode<synchronous>, transform_indices = @transform_6, window_bounds = array<i64: 1, 256>}, {pipeline_mode = #tpu.pipeline_mode<synchronous>, transform_indices = @transform_7, window_bounds = array<i64: 256, 256>}, {pipeline_mode = #tpu.pipeline_mode<synchronous>, transform_indices = @transform_8, window_bounds = array<i64: 1, 256>}, {transform_indices = @transform_9, window_bounds = array<i64: 2, 256>}]} {
    %cst = arith.constant 0.000000e+00 : f32
    %0 = vector.broadcast %cst : f32 to vector<264x1xf32>
    %c0 = arith.constant 0 : index
    %c0_0 = arith.constant 0 : index
    %1 = vector.load %arg11[%c0, %c0_0] : memref<264x1xf32, #tpu.memory_space<vmem>>, vector<264x1xf32>
    tpu.vector_store %arg11[%c0, %c0_0], %0 {strides = array<i32>} : memref<264x1xf32, #tpu.memory_space<vmem>>, vector<264x1xf32>,
    %c0_1 = arith.constant 0 : index
    %c0_2 = arith.constant 0 : index
    %2 = vector.load %arg1[%c0_1, %c0_2] : memref<2x128xf32, #tpu.memory_space<vmem>>, vector<2x128xf32>
    %3 = tpu.transpose %2, [1, 0] : vector<2x128xf32> -> vector<128x2xf32>
    %4 = vector.extract_strided_slice %3 {offsets = [0, 0], sizes = [128, 1], strides = [1, 1]} : vector<128x2xf32> to vector<128x1xf32>
    %c0_3 = arith.constant 0 : index
    %c0_4 = arith.constant 0 : index
    %5 = vector.load %arg11[%c0_3, %c0_4] : memref<264x1xf32, #tpu.memory_space<vmem>>, vector<128x1xf32>
    tpu.vector_store %arg11[%c0_3, %c0_4], %4 {strides = array<i32>} : memref<264x1xf32, #tpu.memory_space<vmem>>, vector<128x1xf32>,
    %6 = vector.extract_strided_slice %3 {offsets = [0, 1], sizes = [128, 1], strides = [1, 1]} : vector<128x2xf32> to vector<128x1xf32>
    %c128 = arith.constant 128 : index
    %c0_5 = arith.constant 0 : index
    %7 = vector.load %arg11[%c128, %c0_5] : memref<264x1xf32, #tpu.memory_space<vmem>>, vector<128x1xf32>
    tpu.vector_store %arg11[%c128, %c0_5], %6 {strides = array<i32>} : memref<264x1xf32, #tpu.memory_space<vmem>>, vector<128x1xf32>,
    %cst_6 = arith.constant 0.000000e+00 : f32
    %8 = vector.broadcast %cst_6 : f32 to vector<8x64xf32>
    %c128_7 = arith.constant 128 : index
    %c0_8 = arith.constant 0 : index
    %9 = vector.load %arg12[%c128_7, %c0_8] : memref<136x64xf32, #tpu.memory_space<vmem>>, vector<8x64xf32>
    tpu.vector_store %arg12[%c128_7, %c0_8], %8 {strides = array<i32>} : memref<136x64xf32, #tpu.memory_space<vmem>>, vector<8x64xf32>,
    %cst_9 = arith.constant 0.000000e+00 : f32
    %10 = vector.broadcast %cst_9 : f32 to vector<8x128xf32>
    %c64 = arith.constant 64 : index
    %c0_10 = arith.constant 0 : index
    %11 = vector.load %arg13[%c64, %c0_10] : memref<72x128xf32, #tpu.memory_space<vmem>>, vector<8x128xf32>
    tpu.vector_store %arg13[%c64, %c0_10], %10 {strides = array<i32>} : memref<72x128xf32, #tpu.memory_space<vmem>>, vector<8x128xf32>,
    %c0_11 = arith.constant 0 : index
    %c0_12 = arith.constant 0 : index
    %12 = vector.load %arg2[%c0_11, %c0_12] : memref<5x64xf32, #tpu.memory_space<vmem>>, vector<5x64xf32>
    %cst_13 = arith.constant 0.000000e+00 : f32
    %13 = vector.broadcast %cst_13 : f32 to vector<128x64xf32>
    %c0_14 = arith.constant 0 : index
    %c0_15 = arith.constant 0 : index
    %14 = tpu.strided_load %arg11[%c0_14, %c0_15] {strides = array<i32: 2, 1>} : memref<264x1xf32, #tpu.memory_space<vmem>>, vector<128x1xf32>
    %15 = vector.extract_strided_slice %12 {offsets = [0, 0], sizes = [1, 64], strides = [1, 1]} : vector<5x64xf32> to vector<1x64xf32>
    %16 = vector.broadcast %14 : vector<128x1xf32> to vector<128x64xf32>
    %17 = vector.broadcast %15 : vector<1x64xf32> to vector<128x64xf32>
    %18 = arith.mulf %16, %17 : vector<128x64xf32>
    %19 = arith.addf %13, %18 : vector<128x64xf32>
    %c1 = arith.constant 1 : index
    %c0_16 = arith.constant 0 : index
    %20 = tpu.strided_load %arg11[%c1, %c0_16] {strides = array<i32: 2, 1>} : memref<264x1xf32, #tpu.memory_space<vmem>>, vector<128x1xf32>
    %21 = vector.extract_strided_slice %12 {offsets = [1, 0], sizes = [1, 64], strides = [1, 1]} : vector<5x64xf32> to vector<1x64xf32>
    %22 = vector.broadcast %20 : vector<128x1xf32> to vector<128x64xf32>
    %23 = vector.broadcast %21 : vector<1x64xf32> to vector<128x64xf32>
    %24 = arith.mulf %22, %23 : vector<128x64xf32>
    %25 = arith.addf %19, %24 : vector<128x64xf32>
    %c2 = arith.constant 2 : index
    %c0_17 = arith.constant 0 : index
    %26 = tpu.strided_load %arg11[%c2, %c0_17] {strides = array<i32: 2, 1>} : memref<264x1xf32, #tpu.memory_space<vmem>>, vector<128x1xf32>
    %27 = vector.extract_strided_slice %12 {offsets = [2, 0], sizes = [1, 64], strides = [1, 1]} : vector<5x64xf32> to vector<1x64xf32>
    %28 = vector.broadcast %26 : vector<128x1xf32> to vector<128x64xf32>
    %29 = vector.broadcast %27 : vector<1x64xf32> to vector<128x64xf32>
    %30 = arith.mulf %28, %29 : vector<128x64xf32>
    %31 = arith.addf %25, %30 : vector<128x64xf32>
    %c3 = arith.constant 3 : index
    %c0_18 = arith.constant 0 : index
    %32 = tpu.strided_load %arg11[%c3, %c0_18] {strides = array<i32: 2, 1>} : memref<264x1xf32, #tpu.memory_space<vmem>>, vector<128x1xf32>
    %33 = vector.extract_strided_slice %12 {offsets = [3, 0], sizes = [1, 64], strides = [1, 1]} : vector<5x64xf32> to vector<1x64xf32>
    %34 = vector.broadcast %32 : vector<128x1xf32> to vector<128x64xf32>
    %35 = vector.broadcast %33 : vector<1x64xf32> to vector<128x64xf32>
    %36 = arith.mulf %34, %35 : vector<128x64xf32>
    %37 = arith.addf %31, %36 : vector<128x64xf32>
    %c4 = arith.constant 4 : index
    %c0_19 = arith.constant 0 : index
    %38 = tpu.strided_load %arg11[%c4, %c0_19] {strides = array<i32: 2, 1>} : memref<264x1xf32, #tpu.memory_space<vmem>>, vector<128x1xf32>
    %39 = vector.extract_strided_slice %12 {offsets = [4, 0], sizes = [1, 64], strides = [1, 1]} : vector<5x64xf32> to vector<1x64xf32>
    %40 = vector.broadcast %38 : vector<128x1xf32> to vector<128x64xf32>
    %41 = vector.broadcast %39 : vector<1x64xf32> to vector<128x64xf32>
    %42 = arith.mulf %40, %41 : vector<128x64xf32>
    %43 = arith.addf %37, %42 : vector<128x64xf32>
    %c0_20 = arith.constant 0 : index
    %c0_21 = arith.constant 0 : index
    %44 = vector.load %arg3[%c0_20, %c0_21] : memref<1x64xf32, #tpu.memory_space<vmem>>, vector<1x64xf32>
    %45 = vector.broadcast %44 : vector<1x64xf32> to vector<128x64xf32>
    %46 = arith.addf %43, %45 : vector<128x64xf32>
    %cst_22 = arith.constant 0.000000e+00 : f32
    %47 = vector.broadcast %cst_22 : f32 to vector<128x64xf32>
    %48 = arith.maximumf %46, %47 : vector<128x64xf32>
    %c0_23 = arith.constant 0 : index
    %c0_24 = arith.constant 0 : index
    %49 = vector.load %arg12[%c0_23, %c0_24] : memref<136x64xf32, #tpu.memory_space<vmem>>, vector<128x64xf32>
    tpu.vector_store %arg12[%c0_23, %c0_24], %48 {strides = array<i32>} : memref<136x64xf32, #tpu.memory_space<vmem>>, vector<128x64xf32>,
    %c0_25 = arith.constant 0 : index
    %c0_26 = arith.constant 0 : index
    %50 = tpu.strided_load %arg12[%c0_25, %c0_26] {strides = array<i32: 2, 1>} : memref<136x64xf32, #tpu.memory_space<vmem>>, vector<64x64xf32>
    %c1_27 = arith.constant 1 : index
    %c0_28 = arith.constant 0 : index
    %51 = tpu.strided_load %arg12[%c1_27, %c0_28] {strides = array<i32: 2, 1>} : memref<136x64xf32, #tpu.memory_space<vmem>>, vector<64x64xf32>
    %c2_29 = arith.constant 2 : index
    %c0_30 = arith.constant 0 : index
    %52 = tpu.strided_load %arg12[%c2_29, %c0_30] {strides = array<i32: 2, 1>} : memref<136x64xf32, #tpu.memory_space<vmem>>, vector<64x64xf32>
    %c3_31 = arith.constant 3 : index
    %c0_32 = arith.constant 0 : index
    %53 = tpu.strided_load %arg12[%c3_31, %c0_32] {strides = array<i32: 2, 1>} : memref<136x64xf32, #tpu.memory_space<vmem>>, vector<64x64xf32>
    %c4_33 = arith.constant 4 : index
    %c0_34 = arith.constant 0 : index
    %54 = tpu.strided_load %arg12[%c4_33, %c0_34] {strides = array<i32: 2, 1>} : memref<136x64xf32, #tpu.memory_space<vmem>>, vector<64x64xf32>
    %55 = tpu.concatenate %50, %51, %52, %53, %54 in 1 : vector<64x64xf32>, vector<64x64xf32>, vector<64x64xf32>, vector<64x64xf32>, vector<64x64xf32> -> vector<64x320xf32>
    %56 = arith.truncf %55 : vector<64x320xf32> to vector<64x320xbf16>
    %c0_35 = arith.constant 0 : index
    %c0_36 = arith.constant 0 : index
    %57 = vector.load %arg4[%c0_35, %c0_36] : memref<320x128xbf16, #tpu.memory_space<vmem>>, vector<320x128xbf16>
    %cst_37 = arith.constant dense<0.000000e+00> : vector<64x128xf32>
    %58 = tpu.matmul %56, %57, %cst_37 {dimension_numbers = #tpu.dot_dimension_numbers<[1], [0], [0], [1], [0, 0, 1, 1], [], []>} : vector<64x320xbf16>, vector<320x128xbf16>, vector<64x128xf32> -> vector<64x128xf32>
    %c0_38 = arith.constant 0 : index
    %c0_39 = arith.constant 0 : index
    %59 = vector.load %arg5[%c0_38, %c0_39] : memref<1x128xf32, #tpu.memory_space<vmem>>, vector<1x128xf32>
    %60 = vector.broadcast %59 : vector<1x128xf32> to vector<64x128xf32>
    %61 = arith.addf %58, %60 : vector<64x128xf32>
    %cst_40 = arith.constant 0.000000e+00 : f32
    %62 = vector.broadcast %cst_40 : f32 to vector<64x128xf32>
    %63 = arith.maximumf %61, %62 : vector<64x128xf32>
    %c0_41 = arith.constant 0 : index
    %c0_42 = arith.constant 0 : index
    %64 = vector.load %arg13[%c0_41, %c0_42] : memref<72x128xf32, #tpu.memory_space<vmem>>, vector<64x128xf32>
    tpu.vector_store %arg13[%c0_41, %c0_42], %63 {strides = array<i32>} : memref<72x128xf32, #tpu.memory_space<vmem>>, vector<64x128xf32>,
    %c0_43 = arith.constant 0 : index
    %c0_44 = arith.constant 0 : index
    %65 = tpu.strided_load %arg13[%c0_43, %c0_44] {strides = array<i32: 2, 1>} : memref<72x128xf32, #tpu.memory_space<vmem>>, vector<32x128xf32>
    %c1_45 = arith.constant 1 : index
    %c0_46 = arith.constant 0 : index
    %66 = tpu.strided_load %arg13[%c1_45, %c0_46] {strides = array<i32: 2, 1>} : memref<72x128xf32, #tpu.memory_space<vmem>>, vector<32x128xf32>
    %c2_47 = arith.constant 2 : index
    %c0_48 = arith.constant 0 : index
    %67 = tpu.strided_load %arg13[%c2_47, %c0_48] {strides = array<i32: 2, 1>} : memref<72x128xf32, #tpu.memory_space<vmem>>, vector<32x128xf32>
    %c3_49 = arith.constant 3 : index
    %c0_50 = arith.constant 0 : index
    %68 = tpu.strided_load %arg13[%c3_49, %c0_50] {strides = array<i32: 2, 1>} : memref<72x128xf32, #tpu.memory_space<vmem>>, vector<32x128xf32>
    %c4_51 = arith.constant 4 : index
    %c0_52 = arith.constant 0 : index
    %69 = tpu.strided_load %arg13[%c4_51, %c0_52] {strides = array<i32: 2, 1>} : memref<72x128xf32, #tpu.memory_space<vmem>>, vector<32x128xf32>
    %70 = tpu.concatenate %65, %66, %67, %68, %69 in 1 : vector<32x128xf32>, vector<32x128xf32>, vector<32x128xf32>, vector<32x128xf32>, vector<32x128xf32> -> vector<32x640xf32>
    %71 = arith.truncf %70 : vector<32x640xf32> to vector<32x640xbf16>
    %c0_53 = arith.constant 0 : index
    %c0_54 = arith.constant 0 : index
    %72 = vector.load %arg6[%c0_53, %c0_54] : memref<640x256xbf16, #tpu.memory_space<vmem>>, vector<640x256xbf16>
    %cst_55 = arith.constant dense<0.000000e+00> : vector<32x256xf32>
    %73 = tpu.matmul %71, %72, %cst_55 {dimension_numbers = #tpu.dot_dimension_numbers<[1], [0], [0], [1], [0, 0, 1, 1], [], []>} : vector<32x640xbf16>, vector<640x256xbf16>, vector<32x256xf32> -> vector<32x256xf32>
    %c0_56 = arith.constant 0 : index
    %c0_57 = arith.constant 0 : index
    %74 = vector.load %arg7[%c0_56, %c0_57] : memref<1x256xf32, #tpu.memory_space<vmem>>, vector<1x256xf32>
    %75 = vector.broadcast %74 : vector<1x256xf32> to vector<32x256xf32>
    %76 = arith.addf %73, %75 : vector<32x256xf32>
    %cst_58 = arith.constant 0.000000e+00 : f32
    %77 = vector.broadcast %cst_58 : f32 to vector<32x256xf32>
    %78 = arith.maximumf %76, %77 : vector<32x256xf32>
    %79 = vector.extract_strided_slice %78 {offsets = [0, 0], sizes = [13, 256], strides = [1, 1]} : vector<32x256xf32> to vector<13x256xf32>
    %cst_59 = arith.constant dense<0.000000e+00> : vector<256xf32>
    %80 = vector.multi_reduction <add>, %79, %cst_59 [0] : vector<13x256xf32> to vector<256xf32>
    %81 = vector.shape_cast %80 : vector<256xf32> to vector<1x256xf32>
    %82 = vector.extract_strided_slice %78 {offsets = [16, 0], sizes = [13, 256], strides = [1, 1]} : vector<32x256xf32> to vector<13x256xf32>
    %cst_60 = arith.constant dense<0.000000e+00> : vector<256xf32>
    %83 = vector.multi_reduction <add>, %82, %cst_60 [0] : vector<13x256xf32> to vector<256xf32>
    %84 = vector.shape_cast %83 : vector<256xf32> to vector<1x256xf32>
    %85 = tpu.concatenate %81, %84 in 0 : vector<1x256xf32>, vector<1x256xf32> -> vector<2x256xf32>
    %cst_61 = arith.constant 0.0769230798 : f32
    %86 = vector.broadcast %cst_61 : f32 to vector<2x256xf32>
    %87 = arith.mulf %85, %86 : vector<2x256xf32>
    %88 = arith.truncf %87 : vector<2x256xf32> to vector<2x256xbf16>
    %c0_62 = arith.constant 0 : index
    %c0_63 = arith.constant 0 : index
    %89 = vector.load %arg8[%c0_62, %c0_63] : memref<256x256xbf16, #tpu.memory_space<vmem>>, vector<256x256xbf16>
    %cst_64 = arith.constant dense<0.000000e+00> : vector<2x256xf32>
    %90 = tpu.matmul %88, %89, %cst_64 {dimension_numbers = #tpu.dot_dimension_numbers<[1], [0], [0], [1], [0, 0, 1, 1], [], []>} : vector<2x256xbf16>, vector<256x256xbf16>, vector<2x256xf32> -> vector<2x256xf32>
    %c0_65 = arith.constant 0 : index
    %c0_66 = arith.constant 0 : index
    %91 = vector.load %arg9[%c0_65, %c0_66] : memref<1x256xf32, #tpu.memory_space<vmem>>, vector<1x256xf32>
    %92 = vector.broadcast %91 : vector<1x256xf32> to vector<2x256xf32>
    %93 = arith.addf %90, %92 : vector<2x256xf32>
    %c0_67 = arith.constant 0 : index
    %c0_68 = arith.constant 0 : index
    %94 = vector.load %arg10[%c0_67, %c0_68] : memref<2x256xf32, #tpu.memory_space<vmem>>, vector<2x256xf32>
    tpu.vector_store %arg10[%c0_67, %c0_68], %93 {strides = array<i32>} : memref<2x256xf32, #tpu.memory_space<vmem>>, vector<2x256xf32>,
    return
  }
  func.func @transform_0(%arg0: i32) -> (i32, i32) {
    %c0_i32 = arith.constant 0 : i32
    %c0_i32_0 = arith.constant 0 : i32
    return %arg0, %c0_i32 : i32, i32
  }
  func.func @transform_1(%arg0: i32) -> (i32, i32) {
    %c0_i32 = arith.constant 0 : i32
    %c0_i32_0 = arith.constant 0 : i32
    %c0_i32_1 = arith.constant 0 : i32
    return %c0_i32, %c0_i32_0 : i32, i32
  }
  func.func @transform_2(%arg0: i32) -> (i32, i32) {
    %c0_i32 = arith.constant 0 : i32
    %c0_i32_0 = arith.constant 0 : i32
    %c0_i32_1 = arith.constant 0 : i32
    return %c0_i32, %c0_i32_0 : i32, i32
  }
  func.func @transform_3(%arg0: i32) -> (i32, i32) {
    %c0_i32 = arith.constant 0 : i32
    %c0_i32_0 = arith.constant 0 : i32
    %c0_i32_1 = arith.constant 0 : i32
    return %c0_i32, %c0_i32_0 : i32, i32
  }
  func.func @transform_4(%arg0: i32) -> (i32, i32) {
    %c0_i32 = arith.constant 0 : i32
    %c0_i32_0 = arith.constant 0 : i32
    %c0_i32_1 = arith.constant 0 : i32
    return %c0_i32, %c0_i32_0 : i32, i32
  }
  func.func @transform_5(%arg0: i32) -> (i32, i32) {
    %c0_i32 = arith.constant 0 : i32
    %c0_i32_0 = arith.constant 0 : i32
    %c0_i32_1 = arith.constant 0 : i32
    return %c0_i32, %c0_i32_0 : i32, i32
  }
  func.func @transform_6(%arg0: i32) -> (i32, i32) {
    %c0_i32 = arith.constant 0 : i32
    %c0_i32_0 = arith.constant 0 : i32
    %c0_i32_1 = arith.constant 0 : i32
    return %c0_i32, %c0_i32_0 : i32, i32
  }
  func.func @transform_7(%arg0: i32) -> (i32, i32) {
    %c0_i32 = arith.constant 0 : i32
    %c0_i32_0 = arith.constant 0 : i32
    %c0_i32_1 = arith.constant 0 : i32
    return %c0_i32, %c0_i32_0 : i32, i32
  }
  func.func @transform_8(%arg0: i32) -> (i32, i32) {
    %c0_i32 = arith.constant 0 : i32
    %c0_i32_0 = arith.constant 0 : i32
    %c0_i32_1 = arith.constant 0 : i32
    return %c0_i32, %c0_i32_0 : i32, i32
  }
  func.func @transform_9(%arg0: i32) -> (i32, i32) {
    %c0_i32 = arith.constant 0 : i32
    %c0_i32_0 = arith.constant 0 : i32
    return %arg0, %c0_i32 : i32, i32
  }
}

</mosaic_0001>

<llo_original>
// kernel: audio_branch_forward.1
$region0: #{audio_branch_forward.1}
  #allocation0 [shape = 'u32[]', space=smem, size = 0x4, offset = 0x4, fixed_abs, tag = 'smem constant byte address 0x4 - core index']
  #allocation1 [shape = 'u32[144,128]{1,0:T(1,128)}', space=vmem, size = 0x12000, scoped, tag = 'internal scratch']
  #allocation2 [shape = 'f32[264,1]{1,0:T(8,128)}', space=vmem, size = 0x21000, scoped, tag = 'scratch operand']
  #allocation3 [shape = 'f32[136,64]{1,0:T(8,128)}', space=vmem, size = 0x11000, scoped, tag = 'scratch operand']
  #allocation4 [shape = 'f32[72,128]{1,0:T(8,128)}', space=vmem, size = 0x9000, scoped, tag = 'scratch operand']
  %s0 = inlined_call_operand.hbm [shape: f32[2,128], index: 0, kind: input, shape index: {}]
  %s1 = inlined_call_operand.vmem [shape: f32[5,64], index: 1, kind: input, shape index: {}]
  %s2 = inlined_call_operand.hbm [shape: f32[1,64], index: 2, kind: input, shape index: {}]
  %s3 = inlined_call_operand.hbm [shape: bf16[320,128], index: 3, kind: input, shape index: {}]
  %s4 = inlined_call_operand.hbm [shape: f32[1,128], index: 4, kind: input, shape index: {}]
  %s5 = inlined_call_operand.hbm [shape: bf16[640,256], index: 5, kind: input, shape index: {}]
  %s6 = inlined_call_operand.vmem [shape: f32[1,256], index: 6, kind: input, shape index: {}]
  %s7 = inlined_call_operand.hbm [shape: bf16[256,256], index: 7, kind: input, shape index: {}]
  %s8 = inlined_call_operand.hbm [shape: f32[1,256], index: 8, kind: input, shape index: {}]
  %s9 = inlined_call_operand.hbm [shape: f32[2,256], index: 9, kind: output, shape index: {}]
  %s10 = sld [smem:[#allocation0]]
  $region74: #{audio_branch_forward.1} parent=0
    _
  %s12 = ssub.s32 1, %s10
  %s13 = scalar_select 0, %s12, %s10
  $region1: #{audio_branch_forward.1} parent=0
    #allocation5 [shape = 'u8[1024]{0}', space=vmem, size = 0x400, scoped, tag = 'input window, operand 0, single buffered']
    #allocation6 [shape = 's32[1]{0}', space=sflag, size = 0x4, scoped, tag = 'scoped memory for audio_branch_forward.1']
    #allocation7 [shape = 's32[1]{0}', space=sflag, size = 0x4, scoped, tag = 'scoped memory for audio_branch_forward.1']
    #allocation8 [shape = 'u8[512]{0}', space=vmem, size = 0x400, scoped, tag = 'input window, operand 2, single buffered']
    #allocation9 [shape = 's32[1]{0}', space=sflag, size = 0x4, scoped, tag = 'scoped memory for audio_branch_forward.1']
    #allocation10 [shape = 'u8[81920]{0}', space=vmem, size = 0x14000, scoped, tag = 'input window, operand 3, single buffered']
    #allocation11 [shape = 'u8[512]{0}', space=vmem, size = 0x400, scoped, tag = 'input window, operand 4, single buffered']
    #allocation12 [shape = 's32[1]{0}', space=sflag, size = 0x4, scoped, tag = 'scoped memory for audio_branch_forward.1']
    #allocation13 [shape = 'u8[327680]{0}', space=vmem, size = 0x50000, scoped, tag = 'input window, operand 5, single buffered']
    #allocation14 [shape = 'u8[131072]{0}', space=vmem, size = 0x20000, scoped, tag = 'input window, operand 7, single buffered']
    #allocation15 [shape = 's32[1]{0}', space=sflag, size = 0x4, scoped, tag = 'scoped memory for audio_branch_forward.1']
    #allocation16 [shape = 'u8[1024]{0}', space=vmem, size = 0x400, scoped, tag = 'input window, operand 8, single buffered']
    #allocation17 [shape = 'u8[2048]{0}', space=vmem, size = 0x800, scoped, tag = 'output window, operand 0, single buffered']
    %14 = vsyncpa [#allocation6], 0
    %15 = vsyncpa [#allocation9], 0
    %16 = vsyncpa [#allocation12], 0
    %17 = vsyncpa [#allocation15], 0
    %18 = vsyncpa [#allocation7], 0
    // Predicated region
    $region2: #{audio_branch_forward.1} parent=1 // pred_check
      _
    $region3: #{audio_branch_forward.1} parent=1 // pred_check_branch
      %20 = sbr.rel (0) target = $region5
    $region4: #{audio_branch_forward.1} parent=1 // pred_region
      %s22 = ssub.s32 32, 32
      %23 = vsyncadd [#allocation6], %s22
      %s25 = sshll.u32 [#allocation5], 4
      %s26 = int_to_ptr.vmem [resolvable:$true] %s25
      %28 = dma.hbm_to_vmem [thread:$0]  %s0, 32, %s26, [#allocation6]
    $region5: #{audio_branch_forward.1} parent=1 // pred_fallthru
      _
    // Predicated region
    $region6: #{audio_branch_forward.1} parent=1 // pred_check
      _
    $region7: #{audio_branch_forward.1} parent=1 // pred_check_branch
      %30 = sbr.rel (0) target = $region9
    $region8: #{audio_branch_forward.1} parent=1 // pred_region
      _
    $region9: #{audio_branch_forward.1} parent=1 // pred_fallthru
      _
    // Predicated region
    $region10: #{audio_branch_forward.1} parent=1 // pred_check
      _
    $region11: #{audio_branch_forward.1} parent=1 // pred_check_branch
      %32 = sbr.rel (0) target = $region13
    $region12: #{audio_branch_forward.1} parent=1 // pred_region
      %s34 = ssub.s32 16, 16
      %35 = vsyncadd [#allocation9], %s34
      %s37 = sshll.u32 [#allocation8], 4
      %s38 = int_to_ptr.vmem [resolvable:$true] %s37
      %40 = dma.hbm_to_vmem [thread:$0]  %s2, 16, %s38, [#allocation9]
    $region13: #{audio_branch_forward.1} parent=1 // pred_fallthru
      _
    // Predicated region
    $region14: #{audio_branch_forward.1} parent=1 // pred_check
      _
    $region15: #{audio_branch_forward.1} parent=1 // pred_check_branch
      %42 = sbr.rel (0) target = $region17
    $region16: #{audio_branch_forward.1} parent=1 // pred_region
      %s44 = ssub.s32 2560, 2560
      %45 = vsyncadd [#allocation9], %s44
      %s46 = sshll.u32 [#allocation10], 4
      %s47 = int_to_ptr.vmem [resolvable:$true] %s46
      %52 = dma.hbm_to_vmem [thread:$0]  %s3, 2560, %s47, [#allocation9], 64, 64, 4
    $region17: #{audio_branch_forward.1} parent=1 // pred_fallthru
      _
    // Predicated region
    $region18: #{audio_branch_forward.1} parent=1 // pred_check
      _
    $region19: #{audio_branch_forward.1} parent=1 // pred_check_branch
      %54 = sbr.rel (0) target = $region21
    $region20: #{audio_branch_forward.1} parent=1 // pred_region
      %s56 = ssub.s32 16, 16
      %57 = vsyncadd [#allocation12], %s56
      %s59 = sshll.u32 [#allocation11], 4
      %s60 = int_to_ptr.vmem [resolvable:$true] %s59
      %62 = dma.hbm_to_vmem [thread:$0]  %s4, 16, %s60, [#allocation12]
    $region21: #{audio_branch_forward.1} parent=1 // pred_fallthru
      _
    // Predicated region
    $region22: #{audio_branch_forward.1} parent=1 // pred_check
      _
    $region23: #{audio_branch_forward.1} parent=1 // pred_check_branch
      %64 = sbr.rel (0) target = $region25
    $region24: #{audio_branch_forward.1} parent=1 // pred_region
      %s66 = ssub.s32 10240, 10240
      %67 = vsyncadd [#allocation12], %s66
      %s68 = sshll.u32 [#allocation13], 4
      %s69 = int_to_ptr.vmem [resolvable:$true] %s68
      %74 = dma.hbm_to_vmem [thread:$0]  %s5, 10240, %s69, [#allocation12], 128, 128, 8
    $region25: #{audio_branch_forward.1} parent=1 // pred_fallthru
      _
    // Predicated region
    $region26: #{audio_branch_forward.1} parent=1 // pred_check
      _
    $region27: #{audio_branch_forward.1} parent=1 // pred_check_branch
      %76 = sbr.rel (0) target = $region29
    $region28: #{audio_branch_forward.1} parent=1 // pred_region
      _
    $region29: #{audio_branch_forward.1} parent=1 // pred_fallthru
      _
    // Predicated region
    $region30: #{audio_branch_forward.1} parent=1 // pred_check
      _
    $region31: #{audio_branch_forward.1} parent=1 // pred_check_branch
      %78 = sbr.rel (0) target = $region33
    $region32: #{audio_branch_forward.1} parent=1 // pred_region
      %s80 = ssub.s32 4096, 4096
      %81 = vsyncadd [#allocation15], %s80
      %s82 = sshll.u32 [#allocation14], 4
      %s83 = int_to_ptr.vmem [resolvable:$true] %s82
      %88 = dma.hbm_to_vmem [thread:$0]  %s7, 4096, %s83, [#allocation15], 128, 128, 8
    $region33: #{audio_branch_forward.1} parent=1 // pred_fallthru
      _
    // Predicated region
    $region34: #{audio_branch_forward.1} parent=1 // pred_check
      _
    $region35: #{audio_branch_forward.1} parent=1 // pred_check_branch
      %90 = sbr.rel (0) target = $region37
    $region36: #{audio_branch_forward.1} parent=1 // pred_region
      %s92 = ssub.s32 32, 32
      %93 = vsyncadd [#allocation15], %s92
      %s95 = sshll.u32 [#allocation16], 4
      %s96 = int_to_ptr.vmem [resolvable:$true] %s95
      %98 = dma.hbm_to_vmem [thread:$0]  %s8, 32, %s96, [#allocation15]
    $region37: #{audio_branch_forward.1} parent=1 // pred_fallthru
      _
    // Predicated region
    $region38: #{audio_branch_forward.1} parent=1 // pred_check
      _
    $region39: #{audio_branch_forward.1} parent=1 // pred_check_branch
      %100 = sbr.rel (0) target = $region41
    $region40: #{audio_branch_forward.1} parent=1 // pred_region
      %101 = dma.done [#allocation6], 32
    $region41: #{audio_branch_forward.1} parent=1 // pred_fallthru
      _
    // Predicated region
    $region42: #{audio_branch_forward.1} parent=1 // pred_check
      _
    $region43: #{audio_branch_forward.1} parent=1 // pred_check_branch
      %103 = sbr.rel (0) target = $region45
    $region44: #{audio_branch_forward.1} parent=1 // pred_region
      %104 = dma.done [#allocation9], 16
    $region45: #{audio_branch_forward.1} parent=1 // pred_fallthru
      _
    // Predicated region
    $region46: #{audio_branch_forward.1} parent=1 // pred_check
      _
    $region47: #{audio_branch_forward.1} parent=1 // pred_check_branch
      %106 = sbr.rel (0) target = $region49
    $region48: #{audio_branch_forward.1} parent=1 // pred_region
      %107 = dma.done [#allocation9], 2560
    $region49: #{audio_branch_forward.1} parent=1 // pred_fallthru
      _
    // Predicated region
    $region50: #{audio_branch_forward.1} parent=1 // pred_check
      _
    $region51: #{audio_branch_forward.1} parent=1 // pred_check_branch
      %109 = sbr.rel (0) target = $region53
    $region52: #{audio_branch_forward.1} parent=1 // pred_region
      %110 = dma.done [#allocation12], 16
    $region53: #{audio_branch_forward.1} parent=1 // pred_fallthru
      _
    // Predicated region
    $region54: #{audio_branch_forward.1} parent=1 // pred_check
      _
    $region55: #{audio_branch_forward.1} parent=1 // pred_check_branch
      %112 = sbr.rel (0) target = $region57
    $region56: #{audio_branch_forward.1} parent=1 // pred_region
      %113 = dma.done [#allocation12], 10240
    $region57: #{audio_branch_forward.1} parent=1 // pred_fallthru
      _
    // Predicated region
    $region58: #{audio_branch_forward.1} parent=1 // pred_check
      _
    $region59: #{audio_branch_forward.1} parent=1 // pred_check_branch
      %115 = sbr.rel (0) target = $region61
    $region60: #{audio_branch_forward.1} parent=1 // pred_region
      %116 = dma.done [#allocation15], 4096
    $region61: #{audio_branch_forward.1} parent=1 // pred_fallthru
      _
    // Predicated region
    $region62: #{audio_branch_forward.1} parent=1 // pred_check
      _
    $region63: #{audio_branch_forward.1} parent=1 // pred_check_branch
      %118 = sbr.rel (0) target = $region65
    $region64: #{audio_branch_forward.1} parent=1 // pred_region
      %119 = dma.done [#allocation15], 32
    $region65: #{audio_branch_forward.1} parent=1 // pred_fallthru
      _
    %vm121 = vcmask 7168
    %122 = vst.msk [vmem:[#allocation2] sm:$0xff] %vm121, 0.0
    %123 = vst.msk [vmem:[#allocation2 + $0x8] sm:$0xff] %vm121, 0.0
    %124 = vst.msk [vmem:[#allocation2 + $0x10] sm:$0xff] %vm121, 0.0
    %125 = vst.msk [vmem:[#allocation2 + $0x18] sm:$0xff] %vm121, 0.0
    %126 = vst.msk [vmem:[#allocation2 + $0x20] sm:$0xff] %vm121, 0.0
    %127 = vst.msk [vmem:[#allocation2 + $0x28] sm:$0xff] %vm121, 0.0
    %128 = vst.msk [vmem:[#allocation2 + $0x30] sm:$0xff] %vm121, 0.0
    %129 = vst.msk [vmem:[#allocation2 + $0x38] sm:$0xff] %vm121, 0.0
    %130 = vst.msk [vmem:[#allocation2 + $0x40] sm:$0xff] %vm121, 0.0
    %131 = vst.msk [vmem:[#allocation2 + $0x48] sm:$0xff] %vm121, 0.0
    %132 = vst.msk [vmem:[#allocation2 + $0x50] sm:$0xff] %vm121, 0.0
    %133 = vst.msk [vmem:[#allocation2 + $0x58] sm:$0xff] %vm121, 0.0
    %134 = vst.msk [vmem:[#allocation2 + $0x60] sm:$0xff] %vm121, 0.0
    %135 = vst.msk [vmem:[#allocation2 + $0x68] sm:$0xff] %vm121, 0.0
    %136 = vst.msk [vmem:[#allocation2 + $0x70] sm:$0xff] %vm121, 0.0
    %137 = vst.msk [vmem:[#allocation2 + $0x78] sm:$0xff] %vm121, 0.0
    %138 = vst.msk [vmem:[#allocation2 + $0x80] sm:$0xff] %vm121, 0.0
    %139 = vst.msk [vmem:[#allocation2 + $0x88] sm:$0xff] %vm121, 0.0
    %140 = vst.msk [vmem:[#allocation2 + $0x90] sm:$0xff] %vm121, 0.0
    %141 = vst.msk [vmem:[#allocation2 + $0x98] sm:$0xff] %vm121, 0.0
    %142 = vst.msk [vmem:[#allocation2 + $0xa0] sm:$0xff] %vm121, 0.0
    %143 = vst.msk [vmem:[#allocation2 + $0xa8] sm:$0xff] %vm121, 0.0
    %144 = vst.msk [vmem:[#allocation2 + $0xb0] sm:$0xff] %vm121, 0.0
    %145 = vst.msk [vmem:[#allocation2 + $0xb8] sm:$0xff] %vm121, 0.0
    %146 = vst.msk [vmem:[#allocation2 + $0xc0] sm:$0xff] %vm121, 0.0
    %147 = vst.msk [vmem:[#allocation2 + $0xc8] sm:$0xff] %vm121, 0.0
    %148 = vst.msk [vmem:[#allocation2 + $0xd0] sm:$0xff] %vm121, 0.0
    %149 = vst.msk [vmem:[#allocation2 + $0xd8] sm:$0xff] %vm121, 0.0
    %150 = vst.msk [vmem:[#allocation2 + $0xe0] sm:$0xff] %vm121, 0.0
    %151 = vst.msk [vmem:[#allocation2 + $0xe8] sm:$0xff] %vm121, 0.0
    %152 = vst.msk [vmem:[#allocation2 + $0xf0] sm:$0xff] %vm121, 0.0
    %153 = vst.msk [vmem:[#allocation2 + $0xf8] sm:$0xff] %vm121, 0.0
    %154 = vst.msk [vmem:[#allocation2 + $0x100] sm:$0xff] %vm121, 0.0
    %v155 = vld [vmem:[#allocation5] sm:$0x3]
    %156 = vxpose.xlu0.b32.start [1/16] %v155, 128
    %157 = vxpose.xlu0.b32.cont [2/16] 0.0, 128
    %158 = vxpose.xlu0.b32.cont [3/16] 0.0, 128
    %159 = vxpose.xlu0.b32.cont [4/16] 0.0, 128
    %160 = vxpose.xlu0.b32.cont [5/16] 0.0, 128
    %161 = vxpose.xlu0.b32.cont [6/16] 0.0, 128
    %162 = vxpose.xlu0.b32.cont [7/16] 0.0, 128
    %163 = vxpose.xlu0.b32.cont [8/16] 0.0, 128
    %164 = vxpose.xlu0.b32.cont [9/16] 0.0, 128
    %165 = vxpose.xlu0.b32.cont [10/16] 0.0, 128
    %166 = vxpose.xlu0.b32.cont [11/16] 0.0, 128
    %167 = vxpose.xlu0.b32.cont [12/16] 0.0, 128
    %168 = vxpose.xlu0.b32.cont [13/16] 0.0, 128
    %169 = vxpose.xlu0.b32.cont [14/16] 0.0, 128
    %170 = vxpose.xlu0.b32.cont [15/16] 0.0, 128
    %171 = vxpose.xlu0.b32.end [16/16] 0.0, 128
    %v172 = vpop.trf.xlu0
    %v173 = vpop.trf.xlu0
    %v174 = vpop.trf.xlu0
    %v175 = vpop.trf.xlu0
    %v176 = vpop.trf.xlu0
    %v177 = vpop.trf.xlu0
    %v178 = vpop.trf.xlu0
    %v179 = vpop.trf.xlu0
    %v180 = vpop.trf.xlu0
    %v181 = vpop.trf.xlu0
    %v182 = vpop.trf.xlu0
    %v183 = vpop.trf.xlu0
    %v184 = vpop.trf.xlu0
    %v185 = vpop.trf.xlu0
    %v186 = vpop.trf.xlu0
    %v187 = vpop.trf.xlu0
    %188 = vst.msk [vmem:[#allocation2] sm:$0xff] %vm121, %v172
    %189 = vst.msk [vmem:[#allocation2 + $0x8] sm:$0xff] %vm121, %v173
    %190 = vst.msk [vmem:[#allocation2 + $0x10] sm:$0xff] %vm121, %v174
    %191 = vst.msk [vmem:[#allocation2 + $0x18] sm:$0xff] %vm121, %v175
    %192 = vst.msk [vmem:[#allocation2 + $0x20] sm:$0xff] %vm121, %v176
    %193 = vst.msk [vmem:[#allocation2 + $0x28] sm:$0xff] %vm121, %v177
    %194 = vst.msk [vmem:[#allocation2 + $0x30] sm:$0xff] %vm121, %v178
    %195 = vst.msk [vmem:[#allocation2 + $0x38] sm:$0xff] %vm121, %v179
    %196 = vst.msk [vmem:[#allocation2 + $0x40] sm:$0xff] %vm121, %v180
    %197 = vst.msk [vmem:[#allocation2 + $0x48] sm:$0xff] %vm121, %v181
    %198 = vst.msk [vmem:[#allocation2 + $0x50] sm:$0xff] %vm121, %v182
    %199 = vst.msk [vmem:[#allocation2 + $0x58] sm:$0xff] %vm121, %v183
    %200 = vst.msk [vmem:[#allocation2 + $0x60] sm:$0xff] %vm121, %v184
    %201 = vst.msk [vmem:[#allocation2 + $0x68] sm:$0xff] %vm121, %v185
    %202 = vst.msk [vmem:[#allocation2 + $0x70] sm:$0xff] %vm121, %v186
    %203 = vst.msk [vmem:[#allocation2 + $0x78] sm:$0xff] %vm121, %v187
    %220 = vrot.lane.b32.xlu0 %v172, 127
    %v221 = vpop.permute.xlu0 %220
    %222 = vrot.lane.b32.xlu0 %v173, 127
    %v223 = vpop.permute.xlu0 %222
    %224 = vrot.lane.b32.xlu0 %v174, 127
    %v225 = vpop.permute.xlu0 %224
    %226 = vrot.lane.b32.xlu0 %v175, 127
    %v227 = vpop.permute.xlu0 %226
    %228 = vrot.lane.b32.xlu0 %v176, 127
    %v229 = vpop.permute.xlu0 %228
    %230 = vrot.lane.b32.xlu0 %v177, 127
    %v231 = vpop.permute.xlu0 %230
    %232 = vrot.lane.b32.xlu0 %v178, 127
    %v233 = vpop.permute.xlu0 %232
    %234 = vrot.lane.b32.xlu0 %v179, 127
    %v235 = vpop.permute.xlu0 %234
    %236 = vrot.lane.b32.xlu0 %v180, 127
    %v237 = vpop.permute.xlu0 %236
    %238 = vrot.lane.b32.xlu0 %v181, 127
    %v239 = vpop.permute.xlu0 %238
    %240 = vrot.lane.b32.xlu0 %v182, 127
    %v241 = vpop.permute.xlu0 %240
    %242 = vrot.lane.b32.xlu0 %v183, 127
    %v243 = vpop.permute.xlu0 %242
    %244 = vrot.lane.b32.xlu0 %v184, 127
    %v245 = vpop.permute.xlu0 %244
    %246 = vrot.lane.b32.xlu0 %v185, 127
    %v247 = vpop.permute.xlu0 %246
    %248 = vrot.lane.b32.xlu0 %v186, 127
    %v249 = vpop.permute.xlu0 %248
    %250 = vrot.lane.b32.xlu0 %v187, 127
    %v251 = vpop.permute.xlu0 %250
    %268 = vst.msk [vmem:[#allocation2 + $0x80] sm:$0xff] %vm121, %v221
    %269 = vst.msk [vmem:[#allocation2 + $0x88] sm:$0xff] %vm121, %v223
    %270 = vst.msk [vmem:[#allocation2 + $0x90] sm:$0xff] %vm121, %v225
    %271 = vst.msk [vmem:[#allocation2 + $0x98] sm:$0xff] %vm121, %v227
    %272 = vst.msk [vmem:[#allocation2 + $0xa0] sm:$0xff] %vm121, %v229
    %273 = vst.msk [vmem:[#allocation2 + $0xa8] sm:$0xff] %vm121, %v231
    %274 = vst.msk [vmem:[#allocation2 + $0xb0] sm:$0xff] %vm121, %v233
    %275 = vst.msk [vmem:[#allocation2 + $0xb8] sm:$0xff] %vm121, %v235
    %276 = vst.msk [vmem:[#allocation2 + $0xc0] sm:$0xff] %vm121, %v237
    %277 = vst.msk [vmem:[#allocation2 + $0xc8] sm:$0xff] %vm121, %v239
    %278 = vst.msk [vmem:[#allocation2 + $0xd0] sm:$0xff] %vm121, %v241
    %279 = vst.msk [vmem:[#allocation2 + $0xd8] sm:$0xff] %vm121, %v243
    %280 = vst.msk [vmem:[#allocation2 + $0xe0] sm:$0xff] %vm121, %v245
    %281 = vst.msk [vmem:[#allocation2 + $0xe8] sm:$0xff] %vm121, %v247
    %282 = vst.msk [vmem:[#allocation2 + $0xf0] sm:$0xff] %vm121, %v249
    %283 = vst.msk [vmem:[#allocation2 + $0xf8] sm:$0xff] %vm121, %v251
    %vm284 = vcmask 523264
    %285 = vst.msk [vmem:[#allocation3 + $0x80] sm:$0xff] %vm284, 0.0
    %286 = vst [vmem:[#allocation4 + $0x40] sm:$0xff] 0.0
    %v287 = vld [vmem:[%s1] sm:$0x1f]
    %v288 = vld [vmem:[#allocation2] ss:$2 sm:$0xff]
    %s289 = scalar_lea.vmem [#allocation2], 16
    %v290 = vld [vmem:[%s289] ss:$2 sm:$0xff]
    %s291 = scalar_lea.vmem [#allocation2], 32
    %v292 = vld [vmem:[%s291] ss:$2 sm:$0xff]
    %s293 = scalar_lea.vmem [#allocation2], 48
    %v294 = vld [vmem:[%s293] ss:$2 sm:$0xff]
    %s295 = scalar_lea.vmem [#allocation2], 64
    %v296 = vld [vmem:[%s295] ss:$2 sm:$0xff]
    %s297 = scalar_lea.vmem [#allocation2], 80
    %v298 = vld [vmem:[%s297] ss:$2 sm:$0xff]
    %s299 = scalar_lea.vmem [#allocation2], 96
    %v300 = vld [vmem:[%s299] ss:$2 sm:$0xff]
    %s301 = scalar_lea.vmem [#allocation2], 112
    %v302 = vld [vmem:[%s301] ss:$2 sm:$0xff]
    %s303 = scalar_lea.vmem [#allocation2], 128
    %v304 = vld [vmem:[%s303] ss:$2 sm:$0xff]
    %s305 = scalar_lea.vmem [#allocation2], 144
    %v306 = vld [vmem:[%s305] ss:$2 sm:$0xff]
    %s307 = scalar_lea.vmem [#allocation2], 160
    %v308 = vld [vmem:[%s307] ss:$2 sm:$0xff]
    %s309 = scalar_lea.vmem [#allocation2], 176
    %v310 = vld [vmem:[%s309] ss:$2 sm:$0xff]
    %s311 = scalar_lea.vmem [#allocation2], 192
    %v312 = vld [vmem:[%s311] ss:$2 sm:$0xff]
    %s313 = scalar_lea.vmem [#allocation2], 208
    %v314 = vld [vmem:[%s313] ss:$2 sm:$0xff]
    %s315 = scalar_lea.vmem [#allocation2], 224
    %v316 = vld [vmem:[%s315] ss:$2 sm:$0xff]
    %s317 = scalar_lea.vmem [#allocation2], 240
    %v318 = vld [vmem:[%s317] ss:$2 sm:$0xff]
    %320 = vset.pattern.permute.xlu0 0
    %321 = vperm.xlu0 %320, %v288
    %v322 = vpop.permute.xlu0 %321
    %325 = vset.pattern.permute.xlu0 0
    %326 = vperm.xlu0 %325, %v290
    %v327 = vpop.permute.xlu0 %326
    %330 = vset.pattern.permute.xlu0 0
    %331 = vperm.xlu0 %330, %v292
    %v332 = vpop.permute.xlu0 %331
    %335 = vset.pattern.permute.xlu0 0
    %336 = vperm.xlu0 %335, %v294
    %v337 = vpop.permute.xlu0 %336
    %340 = vset.pattern.permute.xlu0 0
    %341 = vperm.xlu0 %340, %v296
    %v342 = vpop.permute.xlu0 %341
    %345 = vset.pattern.permute.xlu0 0
    %346 = vperm.xlu0 %345, %v298
    %v347 = vpop.permute.xlu0 %346
    %350 = vset.pattern.permute.xlu0 0
    %351 = vperm.xlu0 %350, %v300
    %v352 = vpop.permute.xlu0 %351
    %355 = vset.pattern.permute.xlu0 0
    %356 = vperm.xlu0 %355, %v302
    %v357 = vpop.permute.xlu0 %356
    %360 = vset.pattern.permute.xlu0 0
    %361 = vperm.xlu0 %360, %v304
    %v362 = vpop.permute.xlu0 %361
    %365 = vset.pattern.permute.xlu0 0
    %366 = vperm.xlu0 %365, %v306
    %v367 = vpop.permute.xlu0 %366
    %370 = vset.pattern.permute.xlu0 0
    %371 = vperm.xlu0 %370, %v308
    %v372 = vpop.permute.xlu0 %371
    %375 = vset.pattern.permute.xlu0 0
    %376 = vperm.xlu0 %375, %v310
    %v377 = vpop.permute.xlu0 %376
    %380 = vset.pattern.permute.xlu0 0
    %381 = vperm.xlu0 %380, %v312
    %v382 = vpop.permute.xlu0 %381
    %385 = vset.pattern.permute.xlu0 0
    %386 = vperm.xlu0 %385, %v314
    %v387 = vpop.permute.xlu0 %386
    %390 = vset.pattern.permute.xlu0 0
    %391 = vperm.xlu0 %390, %v316
    %v392 = vpop.permute.xlu0 %391
    %395 = vset.pattern.permute.xlu0 0
    %396 = vperm.xlu0 %395, %v318
    %v397 = vpop.permute.xlu0 %396
    %v399 = vlaneseq
    %v400 = vshrl.u32 %v399, 7
    %v401 = vsub.s32 0, %v400
    %v402 = vrot.slane %v287, %v401
    %v403 = vmul.f32 %v322, %v402
    %v404 = vmul.f32 %v327, %v402
    %v405 = vmul.f32 %v332, %v402
    %v406 = vmul.f32 %v337, %v402
    %v407 = vmul.f32 %v342, %v402
    %v408 = vmul.f32 %v347, %v402
    %v409 = vmul.f32 %v352, %v402
    %v410 = vmul.f32 %v357, %v402
    %v411 = vmul.f32 %v362, %v402
    %v412 = vmul.f32 %v367, %v402
    %v413 = vmul.f32 %v372, %v402
    %v414 = vmul.f32 %v377, %v402
    %v415 = vmul.f32 %v382, %v402
    %v416 = vmul.f32 %v387, %v402
    %v417 = vmul.f32 %v392, %v402
    %v418 = vmul.f32 %v397, %v402
    %v419 = vadd.f32 %v403, 0.0
    %v420 = vadd.f32 %v404, 0.0
    %v421 = vadd.f32 %v405, 0.0
    %v422 = vadd.f32 %v406, 0.0
    %v423 = vadd.f32 %v407, 0.0
    %v424 = vadd.f32 %v408, 0.0
    %v425 = vadd.f32 %v409, 0.0
    %v426 = vadd.f32 %v410, 0.0
    %v427 = vadd.f32 %v411, 0.0
    %v428 = vadd.f32 %v412, 0.0
    %v429 = vadd.f32 %v413, 0.0
    %v430 = vadd.f32 %v414, 0.0
    %v431 = vadd.f32 %v415, 0.0
    %v432 = vadd.f32 %v416, 0.0
    %v433 = vadd.f32 %v417, 0.0
    %v434 = vadd.f32 %v418, 0.0
    %s435 = scalar_lea.vmem [#allocation2], 1
    %v436 = vld [vmem:[%s435] ss:$2 sm:$0xff]
    %s437 = scalar_lea.vmem [#allocation2], 17
    %v438 = vld [vmem:[%s437] ss:$2 sm:$0xff]
    %s439 = scalar_lea.vmem [#allocation2], 33
    %v440 = vld [vmem:[%s439] ss:$2 sm:$0xff]
    %s441 = scalar_lea.vmem [#allocation2], 49
    %v442 = vld [vmem:[%s441] ss:$2 sm:$0xff]
    %s443 = scalar_lea.vmem [#allocation2], 65
    %v444 = vld [vmem:[%s443] ss:$2 sm:$0xff]
    %s445 = scalar_lea.vmem [#allocation2], 81
    %v446 = vld [vmem:[%s445] ss:$2 sm:$0xff]
    %s447 = scalar_lea.vmem [#allocation2], 97
    %v448 = vld [vmem:[%s447] ss:$2 sm:$0xff]
    %s449 = scalar_lea.vmem [#allocation2], 113
    %v450 = vld [vmem:[%s449] ss:$2 sm:$0xff]
    %s451 = scalar_lea.vmem [#allocation2], 129
    %v452 = vld [vmem:[%s451] ss:$2 sm:$0xff]
    %s453 = scalar_lea.vmem [#allocation2], 145
    %v454 = vld [vmem:[%s453] ss:$2 sm:$0xff]
    %s455 = scalar_lea.vmem [#allocation2], 161
    %v456 = vld [vmem:[%s455] ss:$2 sm:$0xff]
    %s457 = scalar_lea.vmem [#allocation2], 177
    %v458 = vld [vmem:[%s457] ss:$2 sm:$0xff]
    %s459 = scalar_lea.vmem [#allocation2], 193
    %v460 = vld [vmem:[%s459] ss:$2 sm:$0xff]
    %s461 = scalar_lea.vmem [#allocation2], 209
    %v462 = vld [vmem:[%s461] ss:$2 sm:$0xff]
    %s463 = scalar_lea.vmem [#allocation2], 225
    %v464 = vld [vmem:[%s463] ss:$2 sm:$0xff]
    %s465 = scalar_lea.vmem [#allocation2], 241
    %v466 = vld [vmem:[%s465] ss:$2 sm:$0xff]
    %468 = vset.pattern.permute.xlu0 0
    %469 = vperm.xlu0 %468, %v436
    %v470 = vpop.permute.xlu0 %469
    %473 = vset.pattern.permute.xlu0 0
    %474 = vperm.xlu0 %473, %v438
    %v475 = vpop.permute.xlu0 %474
    %478 = vset.pattern.permute.xlu0 0
    %479 = vperm.xlu0 %478, %v440
    %v480 = vpop.permute.xlu0 %479
    %483 = vset.pattern.permute.xlu0 0
    %484 = vperm.xlu0 %483, %v442
    %v485 = vpop.permute.xlu0 %484
    %488 = vset.pattern.permute.xlu0 0
    %489 = vperm.xlu0 %488, %v444
    %v490 = vpop.permute.xlu0 %489
    %493 = vset.pattern.permute.xlu0 0
    %494 = vperm.xlu0 %493, %v446
    %v495 = vpop.permute.xlu0 %494
    %498 = vset.pattern.permute.xlu0 0
    %499 = vperm.xlu0 %498, %v448
    %v500 = vpop.permute.xlu0 %499
    %503 = vset.pattern.permute.xlu0 0
    %504 = vperm.xlu0 %503, %v450
    %v505 = vpop.permute.xlu0 %504
    %508 = vset.pattern.permute.xlu0 0
    %509 = vperm.xlu0 %508, %v452
    %v510 = vpop.permute.xlu0 %509
    %513 = vset.pattern.permute.xlu0 0
    %514 = vperm.xlu0 %513, %v454
    %v515 = vpop.permute.xlu0 %514
    %518 = vset.pattern.permute.xlu0 0
    %519 = vperm.xlu0 %518, %v456
    %v520 = vpop.permute.xlu0 %519
    %523 = vset.pattern.permute.xlu0 0
    %524 = vperm.xlu0 %523, %v458
    %v525 = vpop.permute.xlu0 %524
    %528 = vset.pattern.permute.xlu0 0
    %529 = vperm.xlu0 %528, %v460
    %v530 = vpop.permute.xlu0 %529
    %533 = vset.pattern.permute.xlu0 0
    %534 = vperm.xlu0 %533, %v462
    %v535 = vpop.permute.xlu0 %534
    %538 = vset.pattern.permute.xlu0 0
    %539 = vperm.xlu0 %538, %v464
    %v540 = vpop.permute.xlu0 %539
    %543 = vset.pattern.permute.xlu0 0
    %544 = vperm.xlu0 %543, %v466
    %v545 = vpop.permute.xlu0 %544
    %v547 = vlaneseq
    %v548 = vshrl.u32 %v547, 7
    %v549 = vsub.s32 1, %v548
    %v550 = vrot.slane %v287, %v549
    %v551 = vmul.f32 %v470, %v550
    %v552 = vmul.f32 %v475, %v550
    %v553 = vmul.f32 %v480, %v550
    %v554 = vmul.f32 %v485, %v550
    %v555 = vmul.f32 %v490, %v550
    %v556 = vmul.f32 %v495, %v550
    %v557 = vmul.f32 %v500, %v550
    %v558 = vmul.f32 %v505, %v550
    %v559 = vmul.f32 %v510, %v550
    %v560 = vmul.f32 %v515, %v550
    %v561 = vmul.f32 %v520, %v550
    %v562 = vmul.f32 %v525, %v550
    %v563 = vmul.f32 %v530, %v550
    %v564 = vmul.f32 %v535, %v550
    %v565 = vmul.f32 %v540, %v550
    %v566 = vmul.f32 %v545, %v550
    %v567 = vadd.f32 %v419, %v551
    %v568 = vadd.f32 %v420, %v552
    %v569 = vadd.f32 %v421, %v553
    %v570 = vadd.f32 %v422, %v554
    %v571 = vadd.f32 %v423, %v555
    %v572 = vadd.f32 %v424, %v556
    %v573 = vadd.f32 %v425, %v557
    %v574 = vadd.f32 %v426, %v558
    %v575 = vadd.f32 %v427, %v559
    %v576 = vadd.f32 %v428, %v560
    %v577 = vadd.f32 %v429, %v561
    %v578 = vadd.f32 %v430, %v562
    %v579 = vadd.f32 %v431, %v563
    %v580 = vadd.f32 %v432, %v564
    %v581 = vadd.f32 %v433, %v565
    %v582 = vadd.f32 %v434, %v566
    %s583 = scalar_lea.vmem [#allocation2], 2
    %v584 = vld [vmem:[%s583] ss:$2 sm:$0xff]
    %s585 = scalar_lea.vmem [#allocation2], 18
    %v586 = vld [vmem:[%s585] ss:$2 sm:$0xff]
    %s587 = scalar_lea.vmem [#allocation2], 34
    %v588 = vld [vmem:[%s587] ss:$2 sm:$0xff]
    %s589 = scalar_lea.vmem [#allocation2], 50
    %v590 = vld [vmem:[%s589] ss:$2 sm:$0xff]
    %s591 = scalar_lea.vmem [#allocation2], 66
    %v592 = vld [vmem:[%s591] ss:$2 sm:$0xff]
    %s593 = scalar_lea.vmem [#allocation2], 82
    %v594 = vld [vmem:[%s593] ss:$2 sm:$0xff]
    %s595 = scalar_lea.vmem [#allocation2], 98
    %v596 = vld [vmem:[%s595] ss:$2 sm:$0xff]
    %s597 = scalar_lea.vmem [#allocation2], 114
    %v598 = vld [vmem:[%s597] ss:$2 sm:$0xff]
    %s599 = scalar_lea.vmem [#allocation2], 130
    %v600 = vld [vmem:[%s599] ss:$2 sm:$0xff]
    %s601 = scalar_lea.vmem [#allocation2], 146
    %v602 = vld [vmem:[%s601] ss:$2 sm:$0xff]
    %s603 = scalar_lea.vmem [#allocation2], 162
    %v604 = vld [vmem:[%s603] ss:$2 sm:$0xff]
    %s605 = scalar_lea.vmem [#allocation2], 178
    %v606 = vld [vmem:[%s605] ss:$2 sm:$0xff]
    %s607 = scalar_lea.vmem [#allocation2], 194
    %v608 = vld [vmem:[%s607] ss:$2 sm:$0xff]
    %s609 = scalar_lea.vmem [#allocation2], 210
    %v610 = vld [vmem:[%s609] ss:$2 sm:$0xff]
    %s611 = scalar_lea.vmem [#allocation2], 226
    %v612 = vld [vmem:[%s611] ss:$2 sm:$0xff]
    %s613 = scalar_lea.vmem [#allocation2], 242
    %v614 = vld [vmem:[%s613] ss:$2 sm:$0xff]
    %616 = vset.pattern.permute.xlu0 0
    %617 = vperm.xlu0 %616, %v584
    %v618 = vpop.permute.xlu0 %617
    %621 = vset.pattern.permute.xlu0 0
    %622 = vperm.xlu0 %621, %v586
    %v623 = vpop.permute.xlu0 %622
    %626 = vset.pattern.permute.xlu0 0
    %627 = vperm.xlu0 %626, %v588
    %v628 = vpop.permute.xlu0 %627
    %631 = vset.pattern.permute.xlu0 0
    %632 = vperm.xlu0 %631, %v590
    %v633 = vpop.permute.xlu0 %632
    %636 = vset.pattern.permute.xlu0 0
    %637 = vperm.xlu0 %636, %v592
    %v638 = vpop.permute.xlu0 %637
    %641 = vset.pattern.permute.xlu0 0
    %642 = vperm.xlu0 %641, %v594
    %v643 = vpop.permute.xlu0 %642
    %646 = vset.pattern.permute.xlu0 0
    %647 = vperm.xlu0 %646, %v596
    %v648 = vpop.permute.xlu0 %647
    %651 = vset.pattern.permute.xlu0 0
    %652 = vperm.xlu0 %651, %v598
    %v653 = vpop.permute.xlu0 %652
    %656 = vset.pattern.permute.xlu0 0
    %657 = vperm.xlu0 %656, %v600
    %v658 = vpop.permute.xlu0 %657
    %661 = vset.pattern.permute.xlu0 0
    %662 = vperm.xlu0 %661, %v602
    %v663 = vpop.permute.xlu0 %662
    %666 = vset.pattern.permute.xlu0 0
    %667 = vperm.xlu0 %666, %v604
    %v668 = vpop.permute.xlu0 %667
    %671 = vset.pattern.permute.xlu0 0
    %672 = vperm.xlu0 %671, %v606
    %v673 = vpop.permute.xlu0 %672
    %676 = vset.pattern.permute.xlu0 0
    %677 = vperm.xlu0 %676, %v608
    %v678 = vpop.permute.xlu0 %677
    %681 = vset.pattern.permute.xlu0 0
    %682 = vperm.xlu0 %681, %v610
    %v683 = vpop.permute.xlu0 %682
    %686 = vset.pattern.permute.xlu0 0
    %687 = vperm.xlu0 %686, %v612
    %v688 = vpop.permute.xlu0 %687
    %691 = vset.pattern.permute.xlu0 0
    %692 = vperm.xlu0 %691, %v614
    %v693 = vpop.permute.xlu0 %692
    %v695 = vlaneseq
    %v696 = vshrl.u32 %v695, 7
    %v697 = vsub.s32 2, %v696
    %v698 = vrot.slane %v287, %v697
    %v699 = vmul.f32 %v618, %v698
    %v700 = vmul.f32 %v623, %v698
    %v701 = vmul.f32 %v628, %v698
    %v702 = vmul.f32 %v633, %v698
    %v703 = vmul.f32 %v638, %v698
    %v704 = vmul.f32 %v643, %v698
    %v705 = vmul.f32 %v648, %v698
    %v706 = vmul.f32 %v653, %v698
    %v707 = vmul.f32 %v658, %v698
    %v708 = vmul.f32 %v663, %v698
    %v709 = vmul.f32 %v668, %v698
    %v710 = vmul.f32 %v673, %v698
    %v711 = vmul.f32 %v678, %v698
    %v712 = vmul.f32 %v683, %v698
    %v713 = vmul.f32 %v688, %v698
    %v714 = vmul.f32 %v693, %v698
    %v715 = vadd.f32 %v567, %v699
    %v716 = vadd.f32 %v568, %v700
    %v717 = vadd.f32 %v569, %v701
    %v718 = vadd.f32 %v570, %v702
    %v719 = vadd.f32 %v571, %v703
    %v720 = vadd.f32 %v572, %v704
    %v721 = vadd.f32 %v573, %v705
    %v722 = vadd.f32 %v574, %v706
    %v723 = vadd.f32 %v575, %v707
    %v724 = vadd.f32 %v576, %v708
    %v725 = vadd.f32 %v577, %v709
    %v726 = vadd.f32 %v578, %v710
    %v727 = vadd.f32 %v579, %v711
    %v728 = vadd.f32 %v580, %v712
    %v729 = vadd.f32 %v581, %v713
    %v730 = vadd.f32 %v582, %v714
    %s731 = scalar_lea.vmem [#allocation2], 3
    %v732 = vld [vmem:[%s731] ss:$2 sm:$0xff]
    %s733 = scalar_lea.vmem [#allocation2], 19
    %v734 = vld [vmem:[%s733] ss:$2 sm:$0xff]
    %s735 = scalar_lea.vmem [#allocation2], 35
    %v736 = vld [vmem:[%s735] ss:$2 sm:$0xff]
    %s737 = scalar_lea.vmem [#allocation2], 51
    %v738 = vld [vmem:[%s737] ss:$2 sm:$0xff]
    %s739 = scalar_lea.vmem [#allocation2], 67
    %v740 = vld [vmem:[%s739] ss:$2 sm:$0xff]
    %s741 = scalar_lea.vmem [#allocation2], 83
    %v742 = vld [vmem:[%s741] ss:$2 sm:$0xff]
    %s743 = scalar_lea.vmem [#allocation2], 99
    %v744 = vld [vmem:[%s743] ss:$2 sm:$0xff]
    %s745 = scalar_lea.vmem [#allocation2], 115
    %v746 = vld [vmem:[%s745] ss:$2 sm:$0xff]
    %s747 = scalar_lea.vmem [#allocation2], 131
    %v748 = vld [vmem:[%s747] ss:$2 sm:$0xff]
    %s749 = scalar_lea.vmem [#allocation2], 147
    %v750 = vld [vmem:[%s749] ss:$2 sm:$0xff]
    %s751 = scalar_lea.vmem [#allocation2], 163
    %v752 = vld [vmem:[%s751] ss:$2 sm:$0xff]
    %s753 = scalar_lea.vmem [#allocation2], 179
    %v754 = vld [vmem:[%s753] ss:$2 sm:$0xff]
    %s755 = scalar_lea.vmem [#allocation2], 195
    %v756 = vld [vmem:[%s755] ss:$2 sm:$0xff]
    %s757 = scalar_lea.vmem [#allocation2], 211
    %v758 = vld [vmem:[%s757] ss:$2 sm:$0xff]
    %s759 = scalar_lea.vmem [#allocation2], 227
    %v760 = vld [vmem:[%s759] ss:$2 sm:$0xff]
    %s761 = scalar_lea.vmem [#allocation2], 243
    %v762 = vld [vmem:[%s761] ss:$2 sm:$0xff]
    %764 = vset.pattern.permute.xlu0 0
    %765 = vperm.xlu0 %764, %v732
    %v766 = vpop.permute.xlu0 %765
    %769 = vset.pattern.permute.xlu0 0
    %770 = vperm.xlu0 %769, %v734
    %v771 = vpop.permute.xlu0 %770
    %774 = vset.pattern.permute.xlu0 0
    %775 = vperm.xlu0 %774, %v736
    %v776 = vpop.permute.xlu0 %775
    %779 = vset.pattern.permute.xlu0 0
    %780 = vperm.xlu0 %779, %v738
    %v781 = vpop.permute.xlu0 %780
    %784 = vset.pattern.permute.xlu0 0
    %785 = vperm.xlu0 %784, %v740
    %v786 = vpop.permute.xlu0 %785
    %789 = vset.pattern.permute.xlu0 0
    %790 = vperm.xlu0 %789, %v742
    %v791 = vpop.permute.xlu0 %790
    %794 = vset.pattern.permute.xlu0 0
    %795 = vperm.xlu0 %794, %v744
    %v796 = vpop.permute.xlu0 %795
    %799 = vset.pattern.permute.xlu0 0
    %800 = vperm.xlu0 %799, %v746
    %v801 = vpop.permute.xlu0 %800
    %804 = vset.pattern.permute.xlu0 0
    %805 = vperm.xlu0 %804, %v748
    %v806 = vpop.permute.xlu0 %805
    %809 = vset.pattern.permute.xlu0 0
    %810 = vperm.xlu0 %809, %v750
    %v811 = vpop.permute.xlu0 %810
    %814 = vset.pattern.permute.xlu0 0
    %815 = vperm.xlu0 %814, %v752
    %v816 = vpop.permute.xlu0 %815
    %819 = vset.pattern.permute.xlu0 0
    %820 = vperm.xlu0 %819, %v754
    %v821 = vpop.permute.xlu0 %820
    %824 = vset.pattern.permute.xlu0 0
    %825 = vperm.xlu0 %824, %v756
    %v826 = vpop.permute.xlu0 %825
    %829 = vset.pattern.permute.xlu0 0
    %830 = vperm.xlu0 %829, %v758
    %v831 = vpop.permute.xlu0 %830
    %834 = vset.pattern.permute.xlu0 0
    %835 = vperm.xlu0 %834, %v760
    %v836 = vpop.permute.xlu0 %835
    %839 = vset.pattern.permute.xlu0 0
    %840 = vperm.xlu0 %839, %v762
    %v841 = vpop.permute.xlu0 %840
    %v843 = vlaneseq
    %v844 = vshrl.u32 %v843, 7
    %v845 = vsub.s32 3, %v844
    %v846 = vrot.slane %v287, %v845
    %v847 = vmul.f32 %v766, %v846
    %v848 = vmul.f32 %v771, %v846
    %v849 = vmul.f32 %v776, %v846
    %v850 = vmul.f32 %v781, %v846
    %v851 = vmul.f32 %v786, %v846
    %v852 = vmul.f32 %v791, %v846
    %v853 = vmul.f32 %v796, %v846
    %v854 = vmul.f32 %v801, %v846
    %v855 = vmul.f32 %v806, %v846
    %v856 = vmul.f32 %v811, %v846
    %v857 = vmul.f32 %v816, %v846
    %v858 = vmul.f32 %v821, %v846
    %v859 = vmul.f32 %v826, %v846
    %v860 = vmul.f32 %v831, %v846
    %v861 = vmul.f32 %v836, %v846
    %v862 = vmul.f32 %v841, %v846
    %v863 = vadd.f32 %v715, %v847
    %v864 = vadd.f32 %v716, %v848
    %v865 = vadd.f32 %v717, %v849
    %v866 = vadd.f32 %v718, %v850
    %v867 = vadd.f32 %v719, %v851
    %v868 = vadd.f32 %v720, %v852
    %v869 = vadd.f32 %v721, %v853
    %v870 = vadd.f32 %v722, %v854
    %v871 = vadd.f32 %v723, %v855
    %v872 = vadd.f32 %v724, %v856
    %v873 = vadd.f32 %v725, %v857
    %v874 = vadd.f32 %v726, %v858
    %v875 = vadd.f32 %v727, %v859
    %v876 = vadd.f32 %v728, %v860
    %v877 = vadd.f32 %v729, %v861
    %v878 = vadd.f32 %v730, %v862
    %s879 = scalar_lea.vmem [#allocation2], 4
    %v880 = vld [vmem:[%s879] ss:$2 sm:$0xff]
    %s881 = scalar_lea.vmem [#allocation2], 20
    %v882 = vld [vmem:[%s881] ss:$2 sm:$0xff]
    %s883 = scalar_lea.vmem [#allocation2], 36
    %v884 = vld [vmem:[%s883] ss:$2 sm:$0xff]
    %s885 = scalar_lea.vmem [#allocation2], 52
    %v886 = vld [vmem:[%s885] ss:$2 sm:$0xff]
    %s887 = scalar_lea.vmem [#allocation2], 68
    %v888 = vld [vmem:[%s887] ss:$2 sm:$0xff]
    %s889 = scalar_lea.vmem [#allocation2], 84
    %v890 = vld [vmem:[%s889] ss:$2 sm:$0xff]
    %s891 = scalar_lea.vmem [#allocation2], 100
    %v892 = vld [vmem:[%s891] ss:$2 sm:$0xff]
    %s893 = scalar_lea.vmem [#allocation2], 116
    %v894 = vld [vmem:[%s893] ss:$2 sm:$0xff]
    %s895 = scalar_lea.vmem [#allocation2], 132
    %v896 = vld [vmem:[%s895] ss:$2 sm:$0xff]
    %s897 = scalar_lea.vmem [#allocation2], 148
    %v898 = vld [vmem:[%s897] ss:$2 sm:$0xff]
    %s899 = scalar_lea.vmem [#allocation2], 164
    %v900 = vld [vmem:[%s899] ss:$2 sm:$0xff]
    %s901 = scalar_lea.vmem [#allocation2], 180
    %v902 = vld [vmem:[%s901] ss:$2 sm:$0xff]
    %s903 = scalar_lea.vmem [#allocation2], 196
    %v904 = vld [vmem:[%s903] ss:$2 sm:$0xff]
    %s905 = scalar_lea.vmem [#allocation2], 212
    %v906 = vld [vmem:[%s905] ss:$2 sm:$0xff]
    %s907 = scalar_lea.vmem [#allocation2], 228
    %v908 = vld [vmem:[%s907] ss:$2 sm:$0xff]
    %s909 = scalar_lea.vmem [#allocation2], 244
    %v910 = vld [vmem:[%s909] ss:$2 sm:$0xff]
    %912 = vset.pattern.permute.xlu0 0
    %913 = vperm.xlu0 %912, %v880
    %v914 = vpop.permute.xlu0 %913
    %917 = vset.pattern.permute.xlu0 0
    %918 = vperm.xlu0 %917, %v882
    %v919 = vpop.permute.xlu0 %918
    %922 = vset.pattern.permute.xlu0 0
    %923 = vperm.xlu0 %922, %v884
    %v924 = vpop.permute.xlu0 %923
    %927 = vset.pattern.permute.xlu0 0
    %928 = vperm.xlu0 %927, %v886
    %v929 = vpop.permute.xlu0 %928
    %932 = vset.pattern.permute.xlu0 0
    %933 = vperm.xlu0 %932, %v888
    %v934 = vpop.permute.xlu0 %933
    %937 = vset.pattern.permute.xlu0 0
    %938 = vperm.xlu0 %937, %v890
    %v939 = vpop.permute.xlu0 %938
    %942 = vset.pattern.permute.xlu0 0
    %943 = vperm.xlu0 %942, %v892
    %v944 = vpop.permute.xlu0 %943
    %947 = vset.pattern.permute.xlu0 0
    %948 = vperm.xlu0 %947, %v894
    %v949 = vpop.permute.xlu0 %948
    %952 = vset.pattern.permute.xlu0 0
    %953 = vperm.xlu0 %952, %v896
    %v954 = vpop.permute.xlu0 %953
    %957 = vset.pattern.permute.xlu0 0
    %958 = vperm.xlu0 %957, %v898
    %v959 = vpop.permute.xlu0 %958
    %962 = vset.pattern.permute.xlu0 0
    %963 = vperm.xlu0 %962, %v900
    %v964 = vpop.permute.xlu0 %963
    %967 = vset.pattern.permute.xlu0 0
    %968 = vperm.xlu0 %967, %v902
    %v969 = vpop.permute.xlu0 %968
    %972 = vset.pattern.permute.xlu0 0
    %973 = vperm.xlu0 %972, %v904
    %v974 = vpop.permute.xlu0 %973
    %977 = vset.pattern.permute.xlu0 0
    %978 = vperm.xlu0 %977, %v906
    %v979 = vpop.permute.xlu0 %978
    %982 = vset.pattern.permute.xlu0 0
    %983 = vperm.xlu0 %982, %v908
    %v984 = vpop.permute.xlu0 %983
    %987 = vset.pattern.permute.xlu0 0
    %988 = vperm.xlu0 %987, %v910
    %v989 = vpop.permute.xlu0 %988
    %v991 = vlaneseq
    %v992 = vshrl.u32 %v991, 7
    %v993 = vsub.s32 4, %v992
    %v994 = vrot.slane %v287, %v993
    %v995 = vmul.f32 %v914, %v994
    %v996 = vmul.f32 %v919, %v994
    %v997 = vmul.f32 %v924, %v994
    %v998 = vmul.f32 %v929, %v994
    %v999 = vmul.f32 %v934, %v994
    %v1000 = vmul.f32 %v939, %v994
    %v1001 = vmul.f32 %v944, %v994
    %v1002 = vmul.f32 %v949, %v994
    %v1003 = vmul.f32 %v954, %v994
    %v1004 = vmul.f32 %v959, %v994
    %v1005 = vmul.f32 %v964, %v994
    %v1006 = vmul.f32 %v969, %v994
    %v1007 = vmul.f32 %v974, %v994
    %v1008 = vmul.f32 %v979, %v994
    %v1009 = vmul.f32 %v984, %v994
    %v1010 = vmul.f32 %v989, %v994
    %v1011 = vadd.f32 %v863, %v995
    %v1012 = vadd.f32 %v864, %v996
    %v1013 = vadd.f32 %v865, %v997
    %v1014 = vadd.f32 %v866, %v998
    %v1015 = vadd.f32 %v867, %v999
    %v1016 = vadd.f32 %v868, %v1000
    %v1017 = vadd.f32 %v869, %v1001
    %v1018 = vadd.f32 %v870, %v1002
    %v1019 = vadd.f32 %v871, %v1003
    %v1020 = vadd.f32 %v872, %v1004
    %v1021 = vadd.f32 %v873, %v1005
    %v1022 = vadd.f32 %v874, %v1006
    %v1023 = vadd.f32 %v875, %v1007
    %v1024 = vadd.f32 %v876, %v1008
    %v1025 = vadd.f32 %v877, %v1009
    %v1026 = vadd.f32 %v878, %v1010
    %v1027 = vld [vmem:[#allocation8] sm:$0x1]
    %v1029 = vlaneseq
    %v1030 = vshrl.u32 %v1029, 7
    %v1031 = vsub.s32 0, %v1030
    %v1032 = vrot.slane %v1027, %v1031
    %v1034 = vadd.f32 %v1011, %v1032
    %v1035 = vadd.f32 %v1012, %v1032
    %v1036 = vadd.f32 %v1013, %v1032
    %v1037 = vadd.f32 %v1014, %v1032
    %v1038 = vadd.f32 %v1015, %v1032
    %v1039 = vadd.f32 %v1016, %v1032
    %v1040 = vadd.f32 %v1017, %v1032
    %v1041 = vadd.f32 %v1018, %v1032
    %v1042 = vadd.f32 %v1019, %v1032
    %v1043 = vadd.f32 %v1020, %v1032
    %v1044 = vadd.f32 %v1021, %v1032
    %v1045 = vadd.f32 %v1022, %v1032
    %v1046 = vadd.f32 %v1023, %v1032
    %v1047 = vadd.f32 %v1024, %v1032
    %v1048 = vadd.f32 %v1025, %v1032
    %v1049 = vadd.f32 %v1026, %v1032
    %v1050 = vmax.f32 %v1034, 0.0
    %v1051 = vmax.f32 %v1035, 0.0
    %v1052 = vmax.f32 %v1036, 0.0
    %v1053 = vmax.f32 %v1037, 0.0
    %v1054 = vmax.f32 %v1038, 0.0
    %v1055 = vmax.f32 %v1039, 0.0
    %v1056 = vmax.f32 %v1040, 0.0
    %v1057 = vmax.f32 %v1041, 0.0
    %v1058 = vmax.f32 %v1042, 0.0
    %v1059 = vmax.f32 %v1043, 0.0
    %v1060 = vmax.f32 %v1044, 0.0
    %v1061 = vmax.f32 %v1045, 0.0
    %v1062 = vmax.f32 %v1046, 0.0
    %v1063 = vmax.f32 %v1047, 0.0
    %v1064 = vmax.f32 %v1048, 0.0
    %v1065 = vmax.f32 %v1049, 0.0
    %1066 = vst.msk [vmem:[#allocation3] sm:$0xff] %vm284, %v1050
    %1067 = vst.msk [vmem:[#allocation3 + $0x8] sm:$0xff] %vm284, %v1051
    %1068 = vst.msk [vmem:[#allocation3 + $0x10] sm:$0xff] %vm284, %v1052
    %1069 = vst.msk [vmem:[#allocation3 + $0x18] sm:$0xff] %vm284, %v1053
    %1070 = vst.msk [vmem:[#allocation3 + $0x20] sm:$0xff] %vm284, %v1054
    %1071 = vst.msk [vmem:[#allocation3 + $0x28] sm:$0xff] %vm284, %v1055
    %1072 = vst.msk [vmem:[#allocation3 + $0x30] sm:$0xff] %vm284, %v1056
    %1073 = vst.msk [vmem:[#allocation3 + $0x38] sm:$0xff] %vm284, %v1057
    %1074 = vst.msk [vmem:[#allocation3 + $0x40] sm:$0xff] %vm284, %v1058
    %1075 = vst.msk [vmem:[#allocation3 + $0x48] sm:$0xff] %vm284, %v1059
    %1076 = vst.msk [vmem:[#allocation3 + $0x50] sm:$0xff] %vm284, %v1060
    %1077 = vst.msk [vmem:[#allocation3 + $0x58] sm:$0xff] %vm284, %v1061
    %1078 = vst.msk [vmem:[#allocation3 + $0x60] sm:$0xff] %vm284, %v1062
    %1079 = vst.msk [vmem:[#allocation3 + $0x68] sm:$0xff] %vm284, %v1063
    %1080 = vst.msk [vmem:[#allocation3 + $0x70] sm:$0xff] %vm284, %v1064
    %1081 = vst.msk [vmem:[#allocation3 + $0x78] sm:$0xff] %vm284, %v1065
    %v1082 = vld [vmem:[#allocation3] ss:$2 sm:$0xff]
    %s1083 = scalar_lea.vmem [#allocation3], 16
    %v1084 = vld [vmem:[%s1083] ss:$2 sm:$0xff]
    %s1085 = scalar_lea.vmem [#allocation3], 32
    %v1086 = vld [vmem:[%s1085] ss:$2 sm:$0xff]
    %s1087 = scalar_lea.vmem [#allocation3], 48
    %v1088 = vld [vmem:[%s1087] ss:$2 sm:$0xff]
    %s1089 = scalar_lea.vmem [#allocation3], 64
    %v1090 = vld [vmem:[%s1089] ss:$2 sm:$0xff]
    %s1091 = scalar_lea.vmem [#allocation3], 80
    %v1092 = vld [vmem:[%s1091] ss:$2 sm:$0xff]
    %s1093 = scalar_lea.vmem [#allocation3], 96
    %v1094 = vld [vmem:[%s1093] ss:$2 sm:$0xff]
    %s1095 = scalar_lea.vmem [#allocation3], 112
    %v1096 = vld [vmem:[%s1095] ss:$2 sm:$0xff]
    %s1097 = scalar_lea.vmem [#allocation3], 1
    %v1098 = vld [vmem:[%s1097] ss:$2 sm:$0xff]
    %s1099 = scalar_lea.vmem [#allocation3], 17
    %v1100 = vld [vmem:[%s1099] ss:$2 sm:$0xff]
    %s1101 = scalar_lea.vmem [#allocation3], 33
    %v1102 = vld [vmem:[%s1101] ss:$2 sm:$0xff]
    %s1103 = scalar_lea.vmem [#allocation3], 49
    %v1104 = vld [vmem:[%s1103] ss:$2 sm:$0xff]
    %s1105 = scalar_lea.vmem [#allocation3], 65
    %v1106 = vld [vmem:[%s1105] ss:$2 sm:$0xff]
    %s1107 = scalar_lea.vmem [#allocation3], 81
    %v1108 = vld [vmem:[%s1107] ss:$2 sm:$0xff]
    %s1109 = scalar_lea.vmem [#allocation3], 97
    %v1110 = vld [vmem:[%s1109] ss:$2 sm:$0xff]
    %s1111 = scalar_lea.vmem [#allocation3], 113
    %v1112 = vld [vmem:[%s1111] ss:$2 sm:$0xff]
    %s1113 = scalar_lea.vmem [#allocation3], 2
    %v1114 = vld [vmem:[%s1113] ss:$2 sm:$0xff]
    %s1115 = scalar_lea.vmem [#allocation3], 18
    %v1116 = vld [vmem:[%s1115] ss:$2 sm:$0xff]
    %s1117 = scalar_lea.vmem [#allocation3], 34
    %v1118 = vld [vmem:[%s1117] ss:$2 sm:$0xff]
    %s1119 = scalar_lea.vmem [#allocation3], 50
    %v1120 = vld [vmem:[%s1119] ss:$2 sm:$0xff]
    %s1121 = scalar_lea.vmem [#allocation3], 66
    %v1122 = vld [vmem:[%s1121] ss:$2 sm:$0xff]
    %s1123 = scalar_lea.vmem [#allocation3], 82
    %v1124 = vld [vmem:[%s1123] ss:$2 sm:$0xff]
    %s1125 = scalar_lea.vmem [#allocation3], 98
    %v1126 = vld [vmem:[%s1125] ss:$2 sm:$0xff]
    %s1127 = scalar_lea.vmem [#allocation3], 114
    %v1128 = vld [vmem:[%s1127] ss:$2 sm:$0xff]
    %s1129 = scalar_lea.vmem [#allocation3], 3
    %v1130 = vld [vmem:[%s1129] ss:$2 sm:$0xff]
    %s1131 = scalar_lea.vmem [#allocation3], 19
    %v1132 = vld [vmem:[%s1131] ss:$2 sm:$0xff]
    %s1133 = scalar_lea.vmem [#allocation3], 35
    %v1134 = vld [vmem:[%s1133] ss:$2 sm:$0xff]
    %s1135 = scalar_lea.vmem [#allocation3], 51
    %v1136 = vld [vmem:[%s1135] ss:$2 sm:$0xff]
    %s1137 = scalar_lea.vmem [#allocation3], 67
    %v1138 = vld [vmem:[%s1137] ss:$2 sm:$0xff]
    %s1139 = scalar_lea.vmem [#allocation3], 83
    %v1140 = vld [vmem:[%s1139] ss:$2 sm:$0xff]
    %s1141 = scalar_lea.vmem [#allocation3], 99
    %v1142 = vld [vmem:[%s1141] ss:$2 sm:$0xff]
    %s1143 = scalar_lea.vmem [#allocation3], 115
    %v1144 = vld [vmem:[%s1143] ss:$2 sm:$0xff]
    %s1145 = scalar_lea.vmem [#allocation3], 4
    %v1146 = vld [vmem:[%s1145] ss:$2 sm:$0xff]
    %s1147 = scalar_lea.vmem [#allocation3], 20
    %v1148 = vld [vmem:[%s1147] ss:$2 sm:$0xff]
    %s1149 = scalar_lea.vmem [#allocation3], 36
    %v1150 = vld [vmem:[%s1149] ss:$2 sm:$0xff]
    %s1151 = scalar_lea.vmem [#allocation3], 52
    %v1152 = vld [vmem:[%s1151] ss:$2 sm:$0xff]
    %s1153 = scalar_lea.vmem [#allocation3], 68
    %v1154 = vld [vmem:[%s1153] ss:$2 sm:$0xff]
    %s1155 = scalar_lea.vmem [#allocation3], 84
    %v1156 = vld [vmem:[%s1155] ss:$2 sm:$0xff]
    %s1157 = scalar_lea.vmem [#allocation3], 100
    %v1158 = vld [vmem:[%s1157] ss:$2 sm:$0xff]
    %s1159 = scalar_lea.vmem [#allocation3], 116
    %v1160 = vld [vmem:[%s1159] ss:$2 sm:$0xff]
    %1169 = vrot.lane.b32.xlu0 %v1098, 64
    %v1170 = vpop.permute.xlu0 %1169
    %1171 = vrot.lane.b32.xlu0 %v1100, 64
    %v1172 = vpop.permute.xlu0 %1171
    %1173 = vrot.lane.b32.xlu0 %v1102, 64
    %v1174 = vpop.permute.xlu0 %1173
    %1175 = vrot.lane.b32.xlu0 %v1104, 64
    %v1176 = vpop.permute.xlu0 %1175
    %1177 = vrot.lane.b32.xlu0 %v1106, 64
    %v1178 = vpop.permute.xlu0 %1177
    %1179 = vrot.lane.b32.xlu0 %v1108, 64
    %v1180 = vpop.permute.xlu0 %1179
    %1181 = vrot.lane.b32.xlu0 %v1110, 64
    %v1182 = vpop.permute.xlu0 %1181
    %1183 = vrot.lane.b32.xlu0 %v1112, 64
    %v1184 = vpop.permute.xlu0 %1183
    %1201 = vrot.lane.b32.xlu0 %v1130, 64
    %v1202 = vpop.permute.xlu0 %1201
    %1203 = vrot.lane.b32.xlu0 %v1132, 64
    %v1204 = vpop.permute.xlu0 %1203
    %1205 = vrot.lane.b32.xlu0 %v1134, 64
    %v1206 = vpop.permute.xlu0 %1205
    %1207 = vrot.lane.b32.xlu0 %v1136, 64
    %v1208 = vpop.permute.xlu0 %1207
    %1209 = vrot.lane.b32.xlu0 %v1138, 64
    %v1210 = vpop.permute.xlu0 %1209
    %1211 = vrot.lane.b32.xlu0 %v1140, 64
    %v1212 = vpop.permute.xlu0 %1211
    %1213 = vrot.lane.b32.xlu0 %v1142, 64
    %v1214 = vpop.permute.xlu0 %1213
    %1215 = vrot.lane.b32.xlu0 %v1144, 64
    %v1216 = vpop.permute.xlu0 %1215
    %v1225 = vsel %vm284, %v1082, %v1170
    %v1226 = vsel %vm284, %v1084, %v1172
    %v1227 = vsel %vm284, %v1086, %v1174
    %v1228 = vsel %vm284, %v1088, %v1176
    %v1229 = vsel %vm284, %v1090, %v1178
    %v1230 = vsel %vm284, %v1092, %v1180
    %v1231 = vsel %vm284, %v1094, %v1182
    %v1232 = vsel %vm284, %v1096, %v1184
    %v1233 = vsel %vm284, %v1114, %v1202
    %v1234 = vsel %vm284, %v1116, %v1204
    %v1235 = vsel %vm284, %v1118, %v1206
    %v1236 = vsel %vm284, %v1120, %v1208
    %v1237 = vsel %vm284, %v1122, %v1210
    %v1238 = vsel %vm284, %v1124, %v1212
    %v1239 = vsel %vm284, %v1126, %v1214
    %v1240 = vsel %vm284, %v1128, %v1216
    %v1241 = vpack.c.bf16 %v1226, %v1225
    %v1242 = vpack.c.bf16 %v1234, %v1233
    %v1243 = vpack.c.bf16 %v1148, %v1146
    %v1244 = vpack.c.bf16 %v1228, %v1227
    %v1245 = vpack.c.bf16 %v1236, %v1235
    %v1246 = vpack.c.bf16 %v1152, %v1150
    %v1247 = vpack.c.bf16 %v1230, %v1229
    %v1248 = vpack.c.bf16 %v1238, %v1237
    %v1249 = vpack.c.bf16 %v1156, %v1154
    %v1250 = vpack.c.bf16 %v1232, %v1231
    %v1251 = vpack.c.bf16 %v1240, %v1239
    %v1252 = vpack.c.bf16 %v1160, %v1158
    %v1253 = vld [vmem:[#allocation10] sm:$0xf]
    %v1254 = vld [vmem:[#allocation10 + $0x4] sm:$0xf]
    %v1255 = vld [vmem:[#allocation10 + $0x8] sm:$0xf]
    %v1256 = vld [vmem:[#allocation10 + $0xc] sm:$0xf]
    %v1257 = vld [vmem:[#allocation10 + $0x10] sm:$0xf]
    %v1258 = vld [vmem:[#allocation10 + $0x14] sm:$0xf]
    %v1259 = vld [vmem:[#allocation10 + $0x18] sm:$0xf]
    %v1260 = vld [vmem:[#allocation10 + $0x1c] sm:$0xf]
    %v1261 = vld [vmem:[#allocation10 + $0x20] sm:$0xf]
    %v1262 = vld [vmem:[#allocation10 + $0x24] sm:$0xf]
    %v1263 = vld [vmem:[#allocation10 + $0x28] sm:$0xf]
    %v1264 = vld [vmem:[#allocation10 + $0x2c] sm:$0xf]
    %v1265 = vld [vmem:[#allocation10 + $0x30] sm:$0xf]
    %v1266 = vld [vmem:[#allocation10 + $0x34] sm:$0xf]
    %v1267 = vld [vmem:[#allocation10 + $0x38] sm:$0xf]
    %v1268 = vld [vmem:[#allocation10 + $0x3c] sm:$0xf]
    %v1269 = vld [vmem:[#allocation10 + $0x40] sm:$0xf]
    %v1270 = vld [vmem:[#allocation10 + $0x44] sm:$0xf]
    %v1271 = vld [vmem:[#allocation10 + $0x48] sm:$0xf]
    %v1272 = vld [vmem:[#allocation10 + $0x4c] sm:$0xf]
    %v1273 = vld [vmem:[#allocation10 + $0x50] sm:$0xf]
    %v1274 = vld [vmem:[#allocation10 + $0x54] sm:$0xf]
    %v1275 = vld [vmem:[#allocation10 + $0x58] sm:$0xf]
    %v1276 = vld [vmem:[#allocation10 + $0x5c] sm:$0xf]
    %v1277 = vld [vmem:[#allocation10 + $0x60] sm:$0xf]
    %v1278 = vld [vmem:[#allocation10 + $0x64] sm:$0xf]
    %v1279 = vld [vmem:[#allocation10 + $0x68] sm:$0xf]
    %v1280 = vld [vmem:[#allocation10 + $0x6c] sm:$0xf]
    %v1281 = vld [vmem:[#allocation10 + $0x70] sm:$0xf]
    %v1282 = vld [vmem:[#allocation10 + $0x74] sm:$0xf]
    %v1283 = vld [vmem:[#allocation10 + $0x78] sm:$0xf]
    %v1284 = vld [vmem:[#allocation10 + $0x7c] sm:$0xf]
    %v1285 = vld [vmem:[#allocation10 + $0x80] sm:$0xf]
    %v1286 = vld [vmem:[#allocation10 + $0x84] sm:$0xf]
    %v1287 = vld [vmem:[#allocation10 + $0x88] sm:$0xf]
    %v1288 = vld [vmem:[#allocation10 + $0x8c] sm:$0xf]
    %v1289 = vld [vmem:[#allocation10 + $0x90] sm:$0xf]
    %v1290 = vld [vmem:[#allocation10 + $0x94] sm:$0xf]
    %v1291 = vld [vmem:[#allocation10 + $0x98] sm:$0xf]
    %v1292 = vld [vmem:[#allocation10 + $0x9c] sm:$0xf]
    %v1293 = vld [vmem:[#allocation11] sm:$0x1]
    %v1295 = vlaneseq
    %v1296 = vshrl.u32 %v1295, 7
    %v1297 = vsub.s32 0, %v1296
    %v1298 = vrot.slane %v1293, %v1297
    %v1340 = vunpack.c.l.b16 %v1253
    %v1341 = vunpack.c.l.b16 %v1254
    %v1342 = vunpack.c.l.b16 %v1255
    %v1343 = vunpack.c.l.b16 %v1256
    %v1344 = vunpack.c.l.b16 %v1257
    %v1345 = vunpack.c.l.b16 %v1258
    %v1346 = vunpack.c.l.b16 %v1259
    %v1347 = vunpack.c.l.b16 %v1260
    %v1348 = vunpack.c.l.b16 %v1261
    %v1349 = vunpack.c.l.b16 %v1262
    %v1350 = vunpack.c.l.b16 %v1263
    %v1351 = vunpack.c.l.b16 %v1264
    %v1352 = vunpack.c.l.b16 %v1265
    %v1353 = vunpack.c.l.b16 %v1266
    %v1354 = vunpack.c.l.b16 %v1267
    %v1355 = vunpack.c.l.b16 %v1268
    %v1356 = vunpack.c.l.b16 %v1269
    %v1357 = vunpack.c.l.b16 %v1270
    %v1358 = vunpack.c.l.b16 %v1271
    %v1359 = vunpack.c.l.b16 %v1272
    %v1360 = vunpack.c.l.b16 %v1273
    %v1361 = vunpack.c.l.b16 %v1274
    %v1362 = vunpack.c.l.b16 %v1275
    %v1363 = vunpack.c.l.b16 %v1276
    %v1364 = vunpack.c.l.b16 %v1277
    %v1365 = vunpack.c.l.b16 %v1278
    %v1366 = vunpack.c.l.b16 %v1279
    %v1367 = vunpack.c.l.b16 %v1280
    %v1368 = vunpack.c.l.b16 %v1281
    %v1369 = vunpack.c.l.b16 %v1282
    %v1370 = vunpack.c.l.b16 %v1283
    %v1371 = vunpack.c.l.b16 %v1284
    %v1372 = vunpack.c.l.b16 %v1285
    %v1373 = vunpack.c.l.b16 %v1286
    %v1374 = vunpack.c.l.b16 %v1287
    %v1375 = vunpack.c.l.b16 %v1288
    %v1376 = vunpack.c.l.b16 %v1289
    %v1377 = vunpack.c.l.b16 %v1290
    %v1378 = vunpack.c.l.b16 %v1291
    %v1379 = vunpack.c.l.b16 %v1292
    %v1380 = vpack.c.b16 %v1341, %v1340
    %v1381 = vpack.c.b16 %v1343, %v1342
    %v1382 = vpack.c.b16 %v1345, %v1344
    %v1383 = vpack.c.b16 %v1347, %v1346
    %v1384 = vpack.c.b16 %v1349, %v1348
    %v1385 = vpack.c.b16 %v1351, %v1350
    %v1386 = vpack.c.b16 %v1353, %v1352
    %v1387 = vpack.c.b16 %v1355, %v1354
    %v1388 = vpack.c.b16 %v1357, %v1356
    %v1389 = vpack.c.b16 %v1359, %v1358
    %v1390 = vpack.c.b16 %v1361, %v1360
    %v1391 = vpack.c.b16 %v1363, %v1362
    %v1392 = vpack.c.b16 %v1365, %v1364
    %v1393 = vpack.c.b16 %v1367, %v1366
    %v1394 = vpack.c.b16 %v1369, %v1368
    %v1395 = vpack.c.b16 %v1371, %v1370
    %v1396 = vpack.c.b16 %v1373, %v1372
    %v1397 = vpack.c.b16 %v1375, %v1374
    %v1398 = vpack.c.b16 %v1377, %v1376
    %v1399 = vpack.c.b16 %v1379, %v1378
    %v1421 = vsel %vm284, %v1243, 0
    %v1424 = vsel %vm284, %v1246, 0
    %v1427 = vsel %vm284, %v1249, 0
    %v1430 = vsel %vm284, %v1252, 0
    %1432 = vmatprep.subr.bf16.mxu0 0
    %1433 = vmatpush1.bf16.msra.mxu0 %v1387
    %1434 = vmatprep.subr.bf16.mxu0 0
    %1435 = vmatpush1.bf16.msra.mxu0 %v1386
    %1436 = vmatprep.subr.bf16.mxu0 0
    %1437 = vmatpush1.bf16.msra.mxu0 %v1385
    %1438 = vmatprep.subr.bf16.mxu0 0
    %1439 = vmatpush1.bf16.msra.mxu0 %v1384
    %1440 = vmatprep.subr.bf16.mxu0 0
    %1441 = vmatpush1.bf16.msra.mxu0 %v1383
    %1442 = vmatprep.subr.bf16.mxu0 0
    %1443 = vmatpush1.bf16.msra.mxu0 %v1382
    %1444 = vmatprep.subr.bf16.mxu0 0
    %1445 = vmatpush1.bf16.msra.mxu0 %v1381
    %1446 = vmatprep.subr.bf16.mxu0 0
    %1447 = vmatpush1.bf16.msra.mxu0 %v1380
    %1448 = vmatprep.subr.bf16.mxu0 0
    %1449 = vmatpush2.bf16.msra.mxu0 %v1395
    %1450 = vmatprep.subr.bf16.mxu0 0
    %1451 = vmatpush2.bf16.msra.mxu0 %v1394
    %1452 = vmatprep.subr.bf16.mxu0 0
    %1453 = vmatpush2.bf16.msra.mxu0 %v1393
    %1454 = vmatprep.subr.bf16.mxu0 0
    %1455 = vmatpush2.bf16.msra.mxu0 %v1392
    %1456 = vmatprep.subr.bf16.mxu0 0
    %1457 = vmatpush2.bf16.msra.mxu0 %v1391
    %1458 = vmatprep.subr.bf16.mxu0 0
    %1459 = vmatpush2.bf16.msra.mxu0 %v1390
    %1460 = vmatprep.subr.bf16.mxu0 0
    %1461 = vmatpush2.bf16.msra.mxu0 %v1389
    %1462 = vmatprep.subr.bf16.mxu0 0
    %1463 = vmatpush2.bf16.msra.mxu0 %v1388
    %1464 = vmatprep.mubr.bf16.mxu0 %v1242
    %1465 = vmatmul.mubr.bf16.gmra.mxu0 %v1241
    %v1466 = vpop.f32.mrf.mxu0
    %v1467 = vadd.f32 %v1298, %v1466
    %v1468 = vpop.f32.mrf.mxu0
    %v1469 = vpop.f32.mrf.mxu0
    %v1470 = vadd.f32 %v1298, %v1469
    %v1471 = vpop.f32.mrf.mxu0
    %1472 = vmatprep.mubr.bf16.mxu0 %v1245
    %1473 = vmatmul.mubr.bf16.gmra.mxu0 %v1244
    %v1474 = vpop.f32.mrf.mxu0
    %v1475 = vadd.f32 %v1298, %v1474
    %v1476 = vpop.f32.mrf.mxu0
    %v1477 = vpop.f32.mrf.mxu0
    %v1478 = vadd.f32 %v1298, %v1477
    %v1479 = vpop.f32.mrf.mxu0
    %1480 = vmatprep.mubr.bf16.mxu0 %v1248
    %1481 = vmatmul.mubr.bf16.gmra.mxu0 %v1247
    %v1482 = vpop.f32.mrf.mxu0
    %v1483 = vadd.f32 %v1298, %v1482
    %v1484 = vpop.f32.mrf.mxu0
    %v1485 = vpop.f32.mrf.mxu0
    %v1486 = vadd.f32 %v1298, %v1485
    %v1487 = vpop.f32.mrf.mxu0
    %1488 = vmatprep.mubr.bf16.mxu0 %v1251
    %1489 = vmatmul.mubr.bf16.gmra.mxu0 %v1250
    %v1490 = vpop.f32.mrf.mxu0
    %v1491 = vadd.f32 %v1298, %v1490
    %v1492 = vpop.f32.mrf.mxu0
    %v1493 = vpop.f32.mrf.mxu0
    %v1494 = vadd.f32 %v1298, %v1493
    %v1495 = vpop.f32.mrf.mxu0
    %1496 = vdwg.mxu0
    %1497 = vmatprep.subr.bf16.mxu0 0
    %1498 = vmatpush1.bf16.msra.mxu0 0
    %1499 = vmatprep.subr.bf16.mxu0 0
    %1500 = vmatpush1.bf16.msra.mxu0 0
    %1501 = vmatprep.subr.bf16.mxu0 0
    %1502 = vmatpush1.bf16.msra.mxu0 0
    %1503 = vmatprep.subr.bf16.mxu0 0
    %1504 = vmatpush1.bf16.msra.mxu0 0
    %1505 = vmatprep.subr.bf16.mxu0 0
    %1506 = vmatpush1.bf16.msra.mxu0 %v1399
    %1507 = vmatprep.subr.bf16.mxu0 0
    %1508 = vmatpush1.bf16.msra.mxu0 %v1398
    %1509 = vmatprep.subr.bf16.mxu0 0
    %1510 = vmatpush1.bf16.msra.mxu0 %v1397
    %1511 = vmatprep.subr.bf16.mxu0 0
    %1512 = vmatpush1.bf16.msra.mxu0 %v1396
    %1513 = vmatprep.subr.bf16.mxu0 0
    %1514 = vmatpush2.bf16.msra.mxu0 0
    %1515 = vmatprep.subr.bf16.mxu0 0
    %1516 = vmatpush2.bf16.msra.mxu0 0
    %1517 = vmatprep.subr.bf16.mxu0 0
    %1518 = vmatpush2.bf16.msra.mxu0 0
    %1519 = vmatprep.subr.bf16.mxu0 0
    %1520 = vmatpush2.bf16.msra.mxu0 0
    %1521 = vmatprep.subr.bf16.mxu0 0
    %1522 = vmatpush2.bf16.msra.mxu0 0
    %1523 = vmatprep.subr.bf16.mxu0 0
    %1524 = vmatpush2.bf16.msra.mxu0 0
    %1525 = vmatprep.subr.bf16.mxu0 0
    %1526 = vmatpush2.bf16.msra.mxu0 0
    %1527 = vmatprep.subr.bf16.mxu0 0
    %1528 = vmatpush2.bf16.msra.mxu0 0
    %1529 = vmatprep.mubr.bf16.mxu0 0
    %1530 = vmatmul.mubr.bf16.gmra.mxu0 %v1421
    %v1531 = vpop.f32.mrf.mxu0
    %v1532 = vadd.f32 %v1467, %v1531
    %v1533 = vpop.f32.mrf.mxu0
    %v1534 = vpop.f32.mrf.mxu0
    %v1535 = vadd.f32 %v1470, %v1534
    %v1536 = vpop.f32.mrf.mxu0
    %1537 = vmatprep.mubr.bf16.mxu0 0
    %1538 = vmatmul.mubr.bf16.gmra.mxu0 %v1424
    %v1539 = vpop.f32.mrf.mxu0
    %v1540 = vadd.f32 %v1475, %v1539
    %v1541 = vpop.f32.mrf.mxu0
    %v1542 = vpop.f32.mrf.mxu0
    %v1543 = vadd.f32 %v1478, %v1542
    %v1544 = vpop.f32.mrf.mxu0
    %1545 = vmatprep.mubr.bf16.mxu0 0
    %1546 = vmatmul.mubr.bf16.gmra.mxu0 %v1427
    %v1547 = vpop.f32.mrf.mxu0
    %v1548 = vadd.f32 %v1483, %v1547
    %v1549 = vpop.f32.mrf.mxu0
    %v1550 = vpop.f32.mrf.mxu0
    %v1551 = vadd.f32 %v1486, %v1550
    %v1552 = vpop.f32.mrf.mxu0
    %1553 = vmatprep.mubr.bf16.mxu0 0
    %1554 = vmatmul.mubr.bf16.gmra.mxu0 %v1430
    %v1555 = vpop.f32.mrf.mxu0
    %v1556 = vadd.f32 %v1491, %v1555
    %v1557 = vpop.f32.mrf.mxu0
    %v1558 = vpop.f32.mrf.mxu0
    %v1559 = vadd.f32 %v1494, %v1558
    %v1560 = vpop.f32.mrf.mxu0
    %1561 = vdwg.mxu0
    %v1562 = vmax.f32 %v1532, 0.0
    %v1563 = vmax.f32 %v1535, 0.0
    %v1564 = vmax.f32 %v1540, 0.0
    %v1565 = vmax.f32 %v1543, 0.0
    %v1566 = vmax.f32 %v1548, 0.0
    %v1567 = vmax.f32 %v1551, 0.0
    %v1568 = vmax.f32 %v1556, 0.0
    %v1569 = vmax.f32 %v1559, 0.0
    %1570 = vst [vmem:[#allocation4] sm:$0xff] %v1562
    %1571 = vst [vmem:[#allocation4 + $0x8] sm:$0xff] %v1563
    %1572 = vst [vmem:[#allocation4 + $0x10] sm:$0xff] %v1564
    %1573 = vst [vmem:[#allocation4 + $0x18] sm:$0xff] %v1565
    %1574 = vst [vmem:[#allocation4 + $0x20] sm:$0xff] %v1566
    %1575 = vst [vmem:[#allocation4 + $0x28] sm:$0xff] %v1567
    %1576 = vst [vmem:[#allocation4 + $0x30] sm:$0xff] %v1568
    %1577 = vst [vmem:[#allocation4 + $0x38] sm:$0xff] %v1569
    %v1578 = vld [vmem:[#allocation4] ss:$2 sm:$0xff]
    %s1579 = scalar_lea.vmem [#allocation4], 16
    %v1580 = vld [vmem:[%s1579] ss:$2 sm:$0xff]
    %s1581 = scalar_lea.vmem [#allocation4], 32
    %v1582 = vld [vmem:[%s1581] ss:$2 sm:$0xff]
    %s1583 = scalar_lea.vmem [#allocation4], 48
    %v1584 = vld [vmem:[%s1583] ss:$2 sm:$0xff]
    %s1585 = scalar_lea.vmem [#allocation4], 1
    %v1586 = vld [vmem:[%s1585] ss:$2 sm:$0xff]
    %s1587 = scalar_lea.vmem [#allocation4], 17
    %v1588 = vld [vmem:[%s1587] ss:$2 sm:$0xff]
    %s1589 = scalar_lea.vmem [#allocation4], 33
    %v1590 = vld [vmem:[%s1589] ss:$2 sm:$0xff]
    %s1591 = scalar_lea.vmem [#allocation4], 49
    %v1592 = vld [vmem:[%s1591] ss:$2 sm:$0xff]
    %s1593 = scalar_lea.vmem [#allocation4], 2
    %v1594 = vld [vmem:[%s1593] ss:$2 sm:$0xff]
    %s1595 = scalar_lea.vmem [#allocation4], 18
    %v1596 = vld [vmem:[%s1595] ss:$2 sm:$0xff]
    %s1597 = scalar_lea.vmem [#allocation4], 34
    %v1598 = vld [vmem:[%s1597] ss:$2 sm:$0xff]
    %s1599 = scalar_lea.vmem [#allocation4], 50
    %v1600 = vld [vmem:[%s1599] ss:$2 sm:$0xff]
    %s1601 = scalar_lea.vmem [#allocation4], 3
    %v1602 = vld [vmem:[%s1601] ss:$2 sm:$0xff]
    %s1603 = scalar_lea.vmem [#allocation4], 19
    %v1604 = vld [vmem:[%s1603] ss:$2 sm:$0xff]
    %s1605 = scalar_lea.vmem [#allocation4], 35
    %v1606 = vld [vmem:[%s1605] ss:$2 sm:$0xff]
    %s1607 = scalar_lea.vmem [#allocation4], 51
    %v1608 = vld [vmem:[%s1607] ss:$2 sm:$0xff]
    %s1609 = scalar_lea.vmem [#allocation4], 4
    %v1610 = vld [vmem:[%s1609] ss:$2 sm:$0xff]
    %s1611 = scalar_lea.vmem [#allocation4], 20
    %v1612 = vld [vmem:[%s1611] ss:$2 sm:$0xff]
    %s1613 = scalar_lea.vmem [#allocation4], 36
    %v1614 = vld [vmem:[%s1613] ss:$2 sm:$0xff]
    %s1615 = scalar_lea.vmem [#allocation4], 52
    %v1616 = vld [vmem:[%s1615] ss:$2 sm:$0xff]
    %v1617 = vpack.c.bf16 %v1580, %v1578
    %v1618 = vpack.c.bf16 %v1588, %v1586
    %v1619 = vpack.c.bf16 %v1596, %v1594
    %v1620 = vpack.c.bf16 %v1604, %v1602
    %v1621 = vpack.c.bf16 %v1612, %v1610
    %v1622 = vpack.c.bf16 %v1584, %v1582
    %v1623 = vpack.c.bf16 %v1592, %v1590
    %v1624 = vpack.c.bf16 %v1600, %v1598
    %v1625 = vpack.c.bf16 %v1608, %v1606
    %v1626 = vpack.c.bf16 %v1616, %v1614
    %v1627 = vld [vmem:[#allocation13] sm:$0xff]
    %v1628 = vld [vmem:[#allocation13 + $0x8] sm:$0xff]
    %v1629 = vld [vmem:[#allocation13 + $0x10] sm:$0xff]
    %v1630 = vld [vmem:[#allocation13 + $0x18] sm:$0xff]
    %v1631 = vld [vmem:[#allocation13 + $0x20] sm:$0xff]
    %v1632 = vld [vmem:[#allocation13 + $0x28] sm:$0xff]
    %v1633 = vld [vmem:[#allocation13 + $0x30] sm:$0xff]
    %v1634 = vld [vmem:[#allocation13 + $0x38] sm:$0xff]
    %v1635 = vld [vmem:[#allocation13 + $0x40] sm:$0xff]
    %v1636 = vld [vmem:[#allocation13 + $0x48] sm:$0xff]
    %v1637 = vld [vmem:[#allocation13 + $0x50] sm:$0xff]
    %v1638 = vld [vmem:[#allocation13 + $0x58] sm:$0xff]
    %v1639 = vld [vmem:[#allocation13 + $0x60] sm:$0xff]
    %v1640 = vld [vmem:[#allocation13 + $0x68] sm:$0xff]
    %v1641 = vld [vmem:[#allocation13 + $0x70] sm:$0xff]
    %v1642 = vld [vmem:[#allocation13 + $0x78] sm:$0xff]
    %v1643 = vld [vmem:[#allocation13 + $0x80] sm:$0xff]
    %v1644 = vld [vmem:[#allocation13 + $0x88] sm:$0xff]
    %v1645 = vld [vmem:[#allocation13 + $0x90] sm:$0xff]
    %v1646 = vld [vmem:[#allocation13 + $0x98] sm:$0xff]
    %v1647 = vld [vmem:[#allocation13 + $0xa0] sm:$0xff]
    %v1648 = vld [vmem:[#allocation13 + $0xa8] sm:$0xff]
    %v1649 = vld [vmem:[#allocation13 + $0xb0] sm:$0xff]
    %v1650 = vld [vmem:[#allocation13 + $0xb8] sm:$0xff]
    %v1651 = vld [vmem:[#allocation13 + $0xc0] sm:$0xff]
    %v1652 = vld [vmem:[#allocation13 + $0xc8] sm:$0xff]
    %v1653 = vld [vmem:[#allocation13 + $0xd0] sm:$0xff]
    %v1654 = vld [vmem:[#allocation13 + $0xd8] sm:$0xff]
    %v1655 = vld [vmem:[#allocation13 + $0xe0] sm:$0xff]
    %v1656 = vld [vmem:[#allocation13 + $0xe8] sm:$0xff]
    %v1657 = vld [vmem:[#allocation13 + $0xf0] sm:$0xff]
    %v1658 = vld [vmem:[#allocation13 + $0xf8] sm:$0xff]
    %v1659 = vld [vmem:[#allocation13 + $0x100] sm:$0xff]
    %v1660 = vld [vmem:[#allocation13 + $0x108] sm:$0xff]
    %v1661 = vld [vmem:[#allocation13 + $0x110] sm:$0xff]
    %v1662 = vld [vmem:[#allocation13 + $0x118] sm:$0xff]
    %v1663 = vld [vmem:[#allocation13 + $0x120] sm:$0xff]
    %v1664 = vld [vmem:[#allocation13 + $0x128] sm:$0xff]
    %v1665 = vld [vmem:[#allocation13 + $0x130] sm:$0xff]
    %v1666 = vld [vmem:[#allocation13 + $0x138] sm:$0xff]
    %v1667 = vld [vmem:[#allocation13 + $0x140] sm:$0xff]
    %v1668 = vld [vmem:[#allocation13 + $0x148] sm:$0xff]
    %v1669 = vld [vmem:[#allocation13 + $0x150] sm:$0xff]
    %v1670 = vld [vmem:[#allocation13 + $0x158] sm:$0xff]
    %v1671 = vld [vmem:[#allocation13 + $0x160] sm:$0xff]
    %v1672 = vld [vmem:[#allocation13 + $0x168] sm:$0xff]
    %v1673 = vld [vmem:[#allocation13 + $0x170] sm:$0xff]
    %v1674 = vld [vmem:[#allocation13 + $0x178] sm:$0xff]
    %v1675 = vld [vmem:[#allocation13 + $0x180] sm:$0xff]
    %v1676 = vld [vmem:[#allocation13 + $0x188] sm:$0xff]
    %v1677 = vld [vmem:[#allocation13 + $0x190] sm:$0xff]
    %v1678 = vld [vmem:[#allocation13 + $0x198] sm:$0xff]
    %v1679 = vld [vmem:[#allocation13 + $0x1a0] sm:$0xff]
    %v1680 = vld [vmem:[#allocation13 + $0x1a8] sm:$0xff]
    %v1681 = vld [vmem:[#allocation13 + $0x1b0] sm:$0xff]
    %v1682 = vld [vmem:[#allocation13 + $0x1b8] sm:$0xff]
    %v1683 = vld [vmem:[#allocation13 + $0x1c0] sm:$0xff]
    %v1684 = vld [vmem:[#allocation13 + $0x1c8] sm:$0xff]
    %v1685 = vld [vmem:[#allocation13 + $0x1d0] sm:$0xff]
    %v1686 = vld [vmem:[#allocation13 + $0x1d8] sm:$0xff]
    %v1687 = vld [vmem:[#allocation13 + $0x1e0] sm:$0xff]
    %v1688 = vld [vmem:[#allocation13 + $0x1e8] sm:$0xff]
    %v1689 = vld [vmem:[#allocation13 + $0x1f0] sm:$0xff]
    %v1690 = vld [vmem:[#allocation13 + $0x1f8] sm:$0xff]
    %v1691 = vld [vmem:[#allocation13 + $0x200] sm:$0xff]
    %v1692 = vld [vmem:[#allocation13 + $0x208] sm:$0xff]
    %v1693 = vld [vmem:[#allocation13 + $0x210] sm:$0xff]
    %v1694 = vld [vmem:[#allocation13 + $0x218] sm:$0xff]
    %v1695 = vld [vmem:[#allocation13 + $0x220] sm:$0xff]
    %v1696 = vld [vmem:[#allocation13 + $0x228] sm:$0xff]
    %v1697 = vld [vmem:[#allocation13 + $0x230] sm:$0xff]
    %v1698 = vld [vmem:[#allocation13 + $0x238] sm:$0xff]
    %v1699 = vld [vmem:[#allocation13 + $0x240] sm:$0xff]
    %v1700 = vld [vmem:[#allocation13 + $0x248] sm:$0xff]
    %v1701 = vld [vmem:[#allocation13 + $0x250] sm:$0xff]
    %v1702 = vld [vmem:[#allocation13 + $0x258] sm:$0xff]
    %v1703 = vld [vmem:[#allocation13 + $0x260] sm:$0xff]
    %v1704 = vld [vmem:[#allocation13 + $0x268] sm:$0xff]
    %v1705 = vld [vmem:[#allocation13 + $0x270] sm:$0xff]
    %v1706 = vld [vmem:[#allocation13 + $0x278] sm:$0xff]
    %v1707 = vld [vmem:[%s6] sm:$0x3]
    %v1709 = vlaneseq
    %v1710 = vshrl.u32 %v1709, 7
    %v1711 = vsub.s32 0, %v1710
    %v1712 = vrot.slane %v1707, %v1711
    %v1713 = vlaneseq
    %v1714 = vshrl.u32 %v1713, 7
    %v1715 = vsub.s32 1, %v1714
    %v1716 = vrot.slane %v1707, %v1715
    %v1799 = vunpack.c.l.b16 %v1627
    %v1800 = vunpack.c.h.b16 %v1627
    %v1801 = vunpack.c.l.b16 %v1628
    %v1802 = vunpack.c.h.b16 %v1628
    %v1803 = vunpack.c.l.b16 %v1629
    %v1804 = vunpack.c.h.b16 %v1629
    %v1805 = vunpack.c.l.b16 %v1630
    %v1806 = vunpack.c.h.b16 %v1630
    %v1807 = vunpack.c.l.b16 %v1631
    %v1808 = vunpack.c.h.b16 %v1631
    %v1809 = vunpack.c.l.b16 %v1632
    %v1810 = vunpack.c.h.b16 %v1632
    %v1811 = vunpack.c.l.b16 %v1633
    %v1812 = vunpack.c.h.b16 %v1633
    %v1813 = vunpack.c.l.b16 %v1634
    %v1814 = vunpack.c.h.b16 %v1634
    %v1815 = vunpack.c.l.b16 %v1635
    %v1816 = vunpack.c.h.b16 %v1635
    %v1817 = vunpack.c.l.b16 %v1636
    %v1818 = vunpack.c.h.b16 %v1636
    %v1819 = vunpack.c.l.b16 %v1637
    %v1820 = vunpack.c.h.b16 %v1637
    %v1821 = vunpack.c.l.b16 %v1638
    %v1822 = vunpack.c.h.b16 %v1638
    %v1823 = vunpack.c.l.b16 %v1639
    %v1824 = vunpack.c.h.b16 %v1639
    %v1825 = vunpack.c.l.b16 %v1640
    %v1826 = vunpack.c.h.b16 %v1640
    %v1827 = vunpack.c.l.b16 %v1641
    %v1828 = vunpack.c.h.b16 %v1641
    %v1829 = vunpack.c.l.b16 %v1642
    %v1830 = vunpack.c.h.b16 %v1642
    %v1831 = vunpack.c.l.b16 %v1643
    %v1832 = vunpack.c.h.b16 %v1643
    %v1833 = vunpack.c.l.b16 %v1644
    %v1834 = vunpack.c.h.b16 %v1644
    %v1835 = vunpack.c.l.b16 %v1645
    %v1836 = vunpack.c.h.b16 %v1645
    %v1837 = vunpack.c.l.b16 %v1646
    %v1838 = vunpack.c.h.b16 %v1646
    %v1839 = vunpack.c.l.b16 %v1647
    %v1840 = vunpack.c.h.b16 %v1647
    %v1841 = vunpack.c.l.b16 %v1648
    %v1842 = vunpack.c.h.b16 %v1648
    %v1843 = vunpack.c.l.b16 %v1649
    %v1844 = vunpack.c.h.b16 %v1649
    %v1845 = vunpack.c.l.b16 %v1650
    %v1846 = vunpack.c.h.b16 %v1650
    %v1847 = vunpack.c.l.b16 %v1651
    %v1848 = vunpack.c.h.b16 %v1651
    %v1849 = vunpack.c.l.b16 %v1652
    %v1850 = vunpack.c.h.b16 %v1652
    %v1851 = vunpack.c.l.b16 %v1653
    %v1852 = vunpack.c.h.b16 %v1653
    %v1853 = vunpack.c.l.b16 %v1654
    %v1854 = vunpack.c.h.b16 %v1654
    %v1855 = vunpack.c.l.b16 %v1655
    %v1856 = vunpack.c.h.b16 %v1655
    %v1857 = vunpack.c.l.b16 %v1656
    %v1858 = vunpack.c.h.b16 %v1656
    %v1859 = vunpack.c.l.b16 %v1657
    %v1860 = vunpack.c.h.b16 %v1657
    %v1861 = vunpack.c.l.b16 %v1658
    %v1862 = vunpack.c.h.b16 %v1658
    %v1863 = vunpack.c.l.b16 %v1659
    %v1864 = vunpack.c.h.b16 %v1659
    %v1865 = vunpack.c.l.b16 %v1660
    %v1866 = vunpack.c.h.b16 %v1660
    %v1867 = vunpack.c.l.b16 %v1661
    %v1868 = vunpack.c.h.b16 %v1661
    %v1869 = vunpack.c.l.b16 %v1662
    %v1870 = vunpack.c.h.b16 %v1662
    %v1871 = vunpack.c.l.b16 %v1663
    %v1872 = vunpack.c.h.b16 %v1663
    %v1873 = vunpack.c.l.b16 %v1664
    %v1874 = vunpack.c.h.b16 %v1664
    %v1875 = vunpack.c.l.b16 %v1665
    %v1876 = vunpack.c.h.b16 %v1665
    %v1877 = vunpack.c.l.b16 %v1666
    %v1878 = vunpack.c.h.b16 %v1666
    %v1879 = vunpack.c.l.b16 %v1667
    %v1880 = vunpack.c.h.b16 %v1667
    %v1881 = vunpack.c.l.b16 %v1668
    %v1882 = vunpack.c.h.b16 %v1668
    %v1883 = vunpack.c.l.b16 %v1669
    %v1884 = vunpack.c.h.b16 %v1669
    %v1885 = vunpack.c.l.b16 %v1670
    %v1886 = vunpack.c.h.b16 %v1670
    %v1887 = vunpack.c.l.b16 %v1671
    %v1888 = vunpack.c.h.b16 %v1671
    %v1889 = vunpack.c.l.b16 %v1672
    %v1890 = vunpack.c.h.b16 %v1672
    %v1891 = vunpack.c.l.b16 %v1673
    %v1892 = vunpack.c.h.b16 %v1673
    %v1893 = vunpack.c.l.b16 %v1674
    %v1894 = vunpack.c.h.b16 %v1674
    %v1895 = vunpack.c.l.b16 %v1675
    %v1896 = vunpack.c.h.b16 %v1675
    %v1897 = vunpack.c.l.b16 %v1676
    %v1898 = vunpack.c.h.b16 %v1676
    %v1899 = vunpack.c.l.b16 %v1677
    %v1900 = vunpack.c.h.b16 %v1677
    %v1901 = vunpack.c.l.b16 %v1678
    %v1902 = vunpack.c.h.b16 %v1678
    %v1903 = vunpack.c.l.b16 %v1679
    %v1904 = vunpack.c.h.b16 %v1679
    %v1905 = vunpack.c.l.b16 %v1680
    %v1906 = vunpack.c.h.b16 %v1680
    %v1907 = vunpack.c.l.b16 %v1681
    %v1908 = vunpack.c.h.b16 %v1681
    %v1909 = vunpack.c.l.b16 %v1682
    %v1910 = vunpack.c.h.b16 %v1682
    %v1911 = vunpack.c.l.b16 %v1683
    %v1912 = vunpack.c.h.b16 %v1683
    %v1913 = vunpack.c.l.b16 %v1684
    %v1914 = vunpack.c.h.b16 %v1684
    %v1915 = vunpack.c.l.b16 %v1685
    %v1916 = vunpack.c.h.b16 %v1685
    %v1917 = vunpack.c.l.b16 %v1686
    %v1918 = vunpack.c.h.b16 %v1686
    %v1919 = vunpack.c.l.b16 %v1687
    %v1920 = vunpack.c.h.b16 %v1687
    %v1921 = vunpack.c.l.b16 %v1688
    %v1922 = vunpack.c.h.b16 %v1688
    %v1923 = vunpack.c.l.b16 %v1689
    %v1924 = vunpack.c.h.b16 %v1689
    %v1925 = vunpack.c.l.b16 %v1690
    %v1926 = vunpack.c.h.b16 %v1690
    %v1927 = vunpack.c.l.b16 %v1691
    %v1928 = vunpack.c.h.b16 %v1691
    %v1929 = vunpack.c.l.b16 %v1692
    %v1930 = vunpack.c.h.b16 %v1692
    %v1931 = vunpack.c.l.b16 %v1693
    %v1932 = vunpack.c.h.b16 %v1693
    %v1933 = vunpack.c.l.b16 %v1694
    %v1934 = vunpack.c.h.b16 %v1694
    %v1935 = vunpack.c.l.b16 %v1695
    %v1936 = vunpack.c.h.b16 %v1695
    %v1937 = vunpack.c.l.b16 %v1696
    %v1938 = vunpack.c.h.b16 %v1696
    %v1939 = vunpack.c.l.b16 %v1697
    %v1940 = vunpack.c.h.b16 %v1697
    %v1941 = vunpack.c.l.b16 %v1698
    %v1942 = vunpack.c.h.b16 %v1698
    %v1943 = vunpack.c.l.b16 %v1699
    %v1944 = vunpack.c.h.b16 %v1699
    %v1945 = vunpack.c.l.b16 %v1700
    %v1946 = vunpack.c.h.b16 %v1700
    %v1947 = vunpack.c.l.b16 %v1701
    %v1948 = vunpack.c.h.b16 %v1701
    %v1949 = vunpack.c.l.b16 %v1702
    %v1950 = vunpack.c.h.b16 %v1702
    %v1951 = vunpack.c.l.b16 %v1703
    %v1952 = vunpack.c.h.b16 %v1703
    %v1953 = vunpack.c.l.b16 %v1704
    %v1954 = vunpack.c.h.b16 %v1704
    %v1955 = vunpack.c.l.b16 %v1705
    %v1956 = vunpack.c.h.b16 %v1705
    %v1957 = vunpack.c.l.b16 %v1706
    %v1958 = vunpack.c.h.b16 %v1706
    %v1959 = vpack.c.b16 %v1801, %v1799
    %v1960 = vpack.c.b16 %v1802, %v1800
    %v1961 = vpack.c.b16 %v1805, %v1803
    %v1962 = vpack.c.b16 %v1806, %v1804
    %v1963 = vpack.c.b16 %v1809, %v1807
    %v1964 = vpack.c.b16 %v1810, %v1808
    %v1965 = vpack.c.b16 %v1813, %v1811
    %v1966 = vpack.c.b16 %v1814, %v1812
    %v1967 = vpack.c.b16 %v1817, %v1815
    %v1968 = vpack.c.b16 %v1818, %v1816
    %v1969 = vpack.c.b16 %v1821, %v1819
    %v1970 = vpack.c.b16 %v1822, %v1820
    %v1971 = vpack.c.b16 %v1825, %v1823
    %v1972 = vpack.c.b16 %v1826, %v1824
    %v1973 = vpack.c.b16 %v1829, %v1827
    %v1974 = vpack.c.b16 %v1830, %v1828
    %v1975 = vpack.c.b16 %v1833, %v1831
    %v1976 = vpack.c.b16 %v1834, %v1832
    %v1977 = vpack.c.b16 %v1837, %v1835
    %v1978 = vpack.c.b16 %v1838, %v1836
    %v1979 = vpack.c.b16 %v1841, %v1839
    %v1980 = vpack.c.b16 %v1842, %v1840
    %v1981 = vpack.c.b16 %v1845, %v1843
    %v1982 = vpack.c.b16 %v1846, %v1844
    %v1983 = vpack.c.b16 %v1849, %v1847
    %v1984 = vpack.c.b16 %v1850, %v1848
    %v1985 = vpack.c.b16 %v1853, %v1851
    %v1986 = vpack.c.b16 %v1854, %v1852
    %v1987 = vpack.c.b16 %v1857, %v1855
    %v1988 = vpack.c.b16 %v1858, %v1856
    %v1989 = vpack.c.b16 %v1861, %v1859
    %v1990 = vpack.c.b16 %v1862, %v1860
    %v1991 = vpack.c.b16 %v1865, %v1863
    %v1992 = vpack.c.b16 %v1866, %v1864
    %v1993 = vpack.c.b16 %v1869, %v1867
    %v1994 = vpack.c.b16 %v1870, %v1868
    %v1995 = vpack.c.b16 %v1873, %v1871
    %v1996 = vpack.c.b16 %v1874, %v1872
    %v1997 = vpack.c.b16 %v1877, %v1875
    %v1998 = vpack.c.b16 %v1878, %v1876
    %v1999 = vpack.c.b16 %v1881, %v1879
    %v2000 = vpack.c.b16 %v1882, %v1880
    %v2001 = vpack.c.b16 %v1885, %v1883
    %v2002 = vpack.c.b16 %v1886, %v1884
    %v2003 = vpack.c.b16 %v1889, %v1887
    %v2004 = vpack.c.b16 %v1890, %v1888
    %v2005 = vpack.c.b16 %v1893, %v1891
    %v2006 = vpack.c.b16 %v1894, %v1892
    %v2007 = vpack.c.b16 %v1897, %v1895
    %v2008 = vpack.c.b16 %v1898, %v1896
    %v2009 = vpack.c.b16 %v1901, %v1899
    %v2010 = vpack.c.b16 %v1902, %v1900
    %v2011 = vpack.c.b16 %v1905, %v1903
    %v2012 = vpack.c.b16 %v1906, %v1904
    %v2013 = vpack.c.b16 %v1909, %v1907
    %v2014 = vpack.c.b16 %v1910, %v1908
    %v2015 = vpack.c.b16 %v1913, %v1911
    %v2016 = vpack.c.b16 %v1914, %v1912
    %v2017 = vpack.c.b16 %v1917, %v1915
    %v2018 = vpack.c.b16 %v1918, %v1916
    %v2019 = vpack.c.b16 %v1921, %v1919
    %v2020 = vpack.c.b16 %v1922, %v1920
    %v2021 = vpack.c.b16 %v1925, %v1923
    %v2022 = vpack.c.b16 %v1926, %v1924
    %v2023 = vpack.c.b16 %v1929, %v1927
    %v2024 = vpack.c.b16 %v1930, %v1928
    %v2025 = vpack.c.b16 %v1933, %v1931
    %v2026 = vpack.c.b16 %v1934, %v1932
    %v2027 = vpack.c.b16 %v1937, %v1935
    %v2028 = vpack.c.b16 %v1938, %v1936
    %v2029 = vpack.c.b16 %v1941, %v1939
    %v2030 = vpack.c.b16 %v1942, %v1940
    %v2031 = vpack.c.b16 %v1945, %v1943
    %v2032 = vpack.c.b16 %v1946, %v1944
    %v2033 = vpack.c.b16 %v1949, %v1947
    %v2034 = vpack.c.b16 %v1950, %v1948
    %v2035 = vpack.c.b16 %v1953, %v1951
    %v2036 = vpack.c.b16 %v1954, %v1952
    %v2037 = vpack.c.b16 %v1957, %v1955
    %v2038 = vpack.c.b16 %v1958, %v1956
    %2119 = vmatprep.subr.bf16.mxu0 %v1974
    %2120 = vmatpush1.bf16.msra.mxu0 %v1973
    %2121 = vmatprep.subr.bf16.mxu0 %v1972
    %2122 = vmatpush1.bf16.msra.mxu0 %v1971
    %2123 = vmatprep.subr.bf16.mxu0 %v1970
    %2124 = vmatpush1.bf16.msra.mxu0 %v1969
    %2125 = vmatprep.subr.bf16.mxu0 %v1968
    %2126 = vmatpush1.bf16.msra.mxu0 %v1967
    %2127 = vmatprep.subr.bf16.mxu0 %v1966
    %2128 = vmatpush1.bf16.msra.mxu0 %v1965
    %2129 = vmatprep.subr.bf16.mxu0 %v1964
    %2130 = vmatpush1.bf16.msra.mxu0 %v1963
    %2131 = vmatprep.subr.bf16.mxu0 %v1962
    %2132 = vmatpush1.bf16.msra.mxu0 %v1961
    %2133 = vmatprep.subr.bf16.mxu0 %v1960
    %2134 = vmatpush1.bf16.msra.mxu0 %v1959
    %2135 = vmatprep.subr.bf16.mxu0 %v1990
    %2136 = vmatpush2.bf16.msra.mxu0 %v1989
    %2137 = vmatprep.subr.bf16.mxu0 %v1988
    %2138 = vmatpush2.bf16.msra.mxu0 %v1987
    %2139 = vmatprep.subr.bf16.mxu0 %v1986
    %2140 = vmatpush2.bf16.msra.mxu0 %v1985
    %2141 = vmatprep.subr.bf16.mxu0 %v1984
    %2142 = vmatpush2.bf16.msra.mxu0 %v1983
    %2143 = vmatprep.subr.bf16.mxu0 %v1982
    %2144 = vmatpush2.bf16.msra.mxu0 %v1981
    %2145 = vmatprep.subr.bf16.mxu0 %v1980
    %2146 = vmatpush2.bf16.msra.mxu0 %v1979
    %2147 = vmatprep.subr.bf16.mxu0 %v1978
    %2148 = vmatpush2.bf16.msra.mxu0 %v1977
    %2149 = vmatprep.subr.bf16.mxu0 %v1976
    %2150 = vmatpush2.bf16.msra.mxu0 %v1975
    %2151 = vmatprep.mubr.bf16.mxu0 %v1618
    %2152 = vmatmul.mubr.bf16.gmra.mxu0 %v1617
    %v2153 = vpop.f32.mrf.mxu0
    %v2154 = vadd.f32 %v1712, %v2153
    %v2155 = vpop.f32.mrf.mxu0
    %v2156 = vadd.f32 %v1716, %v2155
    %v2157 = vpop.f32.mrf.mxu0
    %v2158 = vadd.f32 %v1712, %v2157
    %v2159 = vpop.f32.mrf.mxu0
    %v2160 = vadd.f32 %v1716, %v2159
    %2161 = vmatprep.mubr.bf16.mxu0 %v1623
    %2162 = vmatmul.mubr.bf16.gmra.mxu0 %v1622
    %v2163 = vpop.f32.mrf.mxu0
    %v2164 = vadd.f32 %v1712, %v2163
    %v2165 = vpop.f32.mrf.mxu0
    %v2166 = vadd.f32 %v1716, %v2165
    %v2167 = vpop.f32.mrf.mxu0
    %v2168 = vadd.f32 %v1712, %v2167
    %v2169 = vpop.f32.mrf.mxu0
    %v2170 = vadd.f32 %v1716, %v2169
    %2171 = vdwg.mxu0
    %2172 = vmatprep.subr.bf16.mxu0 %v2006
    %2173 = vmatpush1.bf16.msra.mxu0 %v2005
    %2174 = vmatprep.subr.bf16.mxu0 %v2004
    %2175 = vmatpush1.bf16.msra.mxu0 %v2003
    %2176 = vmatprep.subr.bf16.mxu0 %v2002
    %2177 = vmatpush1.bf16.msra.mxu0 %v2001
    %2178 = vmatprep.subr.bf16.mxu0 %v2000
    %2179 = vmatpush1.bf16.msra.mxu0 %v1999
    %2180 = vmatprep.subr.bf16.mxu0 %v1998
    %2181 = vmatpush1.bf16.msra.mxu0 %v1997
    %2182 = vmatprep.subr.bf16.mxu0 %v1996
    %2183 = vmatpush1.bf16.msra.mxu0 %v1995
    %2184 = vmatprep.subr.bf16.mxu0 %v1994
    %2185 = vmatpush1.bf16.msra.mxu0 %v1993
    %2186 = vmatprep.subr.bf16.mxu0 %v1992
    %2187 = vmatpush1.bf16.msra.mxu0 %v1991
    %2188 = vmatprep.subr.bf16.mxu0 %v2022
    %2189 = vmatpush2.bf16.msra.mxu0 %v2021
    %2190 = vmatprep.subr.bf16.mxu0 %v2020
    %2191 = vmatpush2.bf16.msra.mxu0 %v2019
    %2192 = vmatprep.subr.bf16.mxu0 %v2018
    %2193 = vmatpush2.bf16.msra.mxu0 %v2017
    %2194 = vmatprep.subr.bf16.mxu0 %v2016
    %2195 = vmatpush2.bf16.msra.mxu0 %v2015
    %2196 = vmatprep.subr.bf16.mxu0 %v2014
    %2197 = vmatpush2.bf16.msra.mxu0 %v2013
    %2198 = vmatprep.subr.bf16.mxu0 %v2012
    %2199 = vmatpush2.bf16.msra.mxu0 %v2011
    %2200 = vmatprep.subr.bf16.mxu0 %v2010
    %2201 = vmatpush2.bf16.msra.mxu0 %v2009
    %2202 = vmatprep.subr.bf16.mxu0 %v2008
    %2203 = vmatpush2.bf16.msra.mxu0 %v2007
    %2204 = vmatprep.mubr.bf16.mxu0 %v1620
    %2205 = vmatmul.mubr.bf16.gmra.mxu0 %v1619
    %v2206 = vpop.f32.mrf.mxu0
    %v2207 = vadd.f32 %v2154, %v2206
    %v2208 = vpop.f32.mrf.mxu0
    %v2209 = vadd.f32 %v2156, %v2208
    %v2210 = vpop.f32.mrf.mxu0
    %v2211 = vadd.f32 %v2158, %v2210
    %v2212 = vpop.f32.mrf.mxu0
    %v2213 = vadd.f32 %v2160, %v2212
    %2214 = vmatprep.mubr.bf16.mxu0 %v1625
    %2215 = vmatmul.mubr.bf16.gmra.mxu0 %v1624
    %v2216 = vpop.f32.mrf.mxu0
    %v2217 = vadd.f32 %v2164, %v2216
    %v2218 = vpop.f32.mrf.mxu0
    %v2219 = vadd.f32 %v2166, %v2218
    %v2220 = vpop.f32.mrf.mxu0
    %v2221 = vadd.f32 %v2168, %v2220
    %v2222 = vpop.f32.mrf.mxu0
    %v2223 = vadd.f32 %v2170, %v2222
    %2224 = vdwg.mxu0
    %2225 = vmatprep.subr.bf16.mxu0 %v2038
    %2226 = vmatpush1.bf16.msra.mxu0 %v2037
    %2227 = vmatprep.subr.bf16.mxu0 %v2036
    %2228 = vmatpush1.bf16.msra.mxu0 %v2035
    %2229 = vmatprep.subr.bf16.mxu0 %v2034
    %2230 = vmatpush1.bf16.msra.mxu0 %v2033
    %2231 = vmatprep.subr.bf16.mxu0 %v2032
    %2232 = vmatpush1.bf16.msra.mxu0 %v2031
    %2233 = vmatprep.subr.bf16.mxu0 %v2030
    %2234 = vmatpush1.bf16.msra.mxu0 %v2029
    %2235 = vmatprep.subr.bf16.mxu0 %v2028
    %2236 = vmatpush1.bf16.msra.mxu0 %v2027
    %2237 = vmatprep.subr.bf16.mxu0 %v2026
    %2238 = vmatpush1.bf16.msra.mxu0 %v2025
    %2239 = vmatprep.subr.bf16.mxu0 %v2024
    %2240 = vmatpush1.bf16.msra.mxu0 %v2023
    %2241 = vmatprep.subr.bf16.mxu0 0
    %2242 = vmatpush2.bf16.msra.mxu0 0
    %2243 = vmatprep.subr.bf16.mxu0 0
    %2244 = vmatpush2.bf16.msra.mxu0 0
    %2245 = vmatprep.subr.bf16.mxu0 0
    %2246 = vmatpush2.bf16.msra.mxu0 0
    %2247 = vmatprep.subr.bf16.mxu0 0
    %2248 = vmatpush2.bf16.msra.mxu0 0
    %2249 = vmatprep.subr.bf16.mxu0 0
    %2250 = vmatpush2.bf16.msra.mxu0 0
    %2251 = vmatprep.subr.bf16.mxu0 0
    %2252 = vmatpush2.bf16.msra.mxu0 0
    %2253 = vmatprep.subr.bf16.mxu0 0
    %2254 = vmatpush2.bf16.msra.mxu0 0
    %2255 = vmatprep.subr.bf16.mxu0 0
    %2256 = vmatpush2.bf16.msra.mxu0 0
    %2257 = vmatprep.mubr.bf16.mxu0 0
    %2258 = vmatmul.mubr.bf16.gmra.mxu0 %v1621
    %v2259 = vpop.f32.mrf.mxu0
    %v2260 = vadd.f32 %v2207, %v2259
    %v2261 = vpop.f32.mrf.mxu0
    %v2262 = vadd.f32 %v2209, %v2261
    %v2263 = vpop.f32.mrf.mxu0
    %v2264 = vadd.f32 %v2211, %v2263
    %v2265 = vpop.f32.mrf.mxu0
    %v2266 = vadd.f32 %v2213, %v2265
    %2267 = vmatprep.mubr.bf16.mxu0 0
    %2268 = vmatmul.mubr.bf16.gmra.mxu0 %v1626
    %v2269 = vpop.f32.mrf.mxu0
    %v2270 = vadd.f32 %v2217, %v2269
    %v2271 = vpop.f32.mrf.mxu0
    %v2272 = vadd.f32 %v2219, %v2271
    %v2273 = vpop.f32.mrf.mxu0
    %v2274 = vadd.f32 %v2221, %v2273
    %v2275 = vpop.f32.mrf.mxu0
    %v2276 = vadd.f32 %v2223, %v2275
    %2277 = vdwg.mxu0
    %v2278 = vmax.f32 %v2260, 0.0
    %v2279 = vmax.f32 %v2262, 0.0
    %v2280 = vmax.f32 %v2264, 0.0
    %v2281 = vmax.f32 %v2266, 0.0
    %v2282 = vmax.f32 %v2270, 0.0
    %v2283 = vmax.f32 %v2272, 0.0
    %v2284 = vmax.f32 %v2274, 0.0
    %v2285 = vmax.f32 %v2276, 0.0
    %vm2286 = vcmask 1044480
    %v2287 = vsel %vm2286, %v2280, 0.0
    %v2288 = vadd.f32 %v2278, %v2287
    %v2289 = vrot.slane %v2288, 4
    %v2290 = vadd.f32 %v2288, %v2289
    %v2291 = vrot.slane %v2290, 2
    %v2292 = vadd.f32 %v2290, %v2291
    %v2293 = vrot.slane %v2292, 1
    %v2294 = vadd.f32 %v2292, %v2293
    %v2295 = vsel %vm2286, %v2281, 0.0
    %v2296 = vadd.f32 %v2279, %v2295
    %v2297 = vrot.slane %v2296, 4
    %v2298 = vadd.f32 %v2296, %v2297
    %v2299 = vrot.slane %v2298, 2
    %v2300 = vadd.f32 %v2298, %v2299
    %v2301 = vrot.slane %v2300, 1
    %v2302 = vadd.f32 %v2300, %v2301
    %v2303 = vsel %vm2286, %v2284, 0.0
    %v2304 = vadd.f32 %v2282, %v2303
    %v2305 = vrot.slane %v2304, 4
    %v2306 = vadd.f32 %v2304, %v2305
    %v2307 = vrot.slane %v2306, 2
    %v2308 = vadd.f32 %v2306, %v2307
    %v2309 = vrot.slane %v2308, 1
    %v2310 = vadd.f32 %v2308, %v2309
    %v2311 = vsel %vm2286, %v2285, 0.0
    %v2312 = vadd.f32 %v2283, %v2311
    %v2313 = vrot.slane %v2312, 4
    %v2314 = vadd.f32 %v2312, %v2313
    %v2315 = vrot.slane %v2314, 2
    %v2316 = vadd.f32 %v2314, %v2315
    %v2317 = vrot.slane %v2316, 1
    %v2318 = vadd.f32 %v2316, %v2317
    %vm2319 = vcmask 1040384
    %v2320 = vsel %vm2319, %v2294, %v2310
    %v2321 = vsel %vm2319, %v2302, %v2318
    %v2322 = vmul.f32 %v2320, 0.07692308
    %v2323 = vmul.f32 %v2321, 0.07692308
    %v2324 = vpack.c.bf16 %v2322, %v2322
    %v2325 = vpack.c.bf16 %v2323, %v2323
    %v2326 = vld [vmem:[#allocation14] sm:$0xff]
    %v2327 = vld [vmem:[#allocation14 + $0x8] sm:$0xff]
    %v2328 = vld [vmem:[#allocation14 + $0x10] sm:$0xff]
    %v2329 = vld [vmem:[#allocation14 + $0x18] sm:$0xff]
    %v2330 = vld [vmem:[#allocation14 + $0x20] sm:$0xff]
    %v2331 = vld [vmem:[#allocation14 + $0x28] sm:$0xff]
    %v2332 = vld [vmem:[#allocation14 + $0x30] sm:$0xff]
    %v2333 = vld [vmem:[#allocation14 + $0x38] sm:$0xff]
    %v2334 = vld [vmem:[#allocation14 + $0x40] sm:$0xff]
    %v2335 = vld [vmem:[#allocation14 + $0x48] sm:$0xff]
    %v2336 = vld [vmem:[#allocation14 + $0x50] sm:$0xff]
    %v2337 = vld [vmem:[#allocation14 + $0x58] sm:$0xff]
    %v2338 = vld [vmem:[#allocation14 + $0x60] sm:$0xff]
    %v2339 = vld [vmem:[#allocation14 + $0x68] sm:$0xff]
    %v2340 = vld [vmem:[#allocation14 + $0x70] sm:$0xff]
    %v2341 = vld [vmem:[#allocation14 + $0x78] sm:$0xff]
    %v2342 = vld [vmem:[#allocation14 + $0x80] sm:$0xff]
    %v2343 = vld [vmem:[#allocation14 + $0x88] sm:$0xff]
    %v2344 = vld [vmem:[#allocation14 + $0x90] sm:$0xff]
    %v2345 = vld [vmem:[#allocation14 + $0x98] sm:$0xff]
    %v2346 = vld [vmem:[#allocation14 + $0xa0] sm:$0xff]
    %v2347 = vld [vmem:[#allocation14 + $0xa8] sm:$0xff]
    %v2348 = vld [vmem:[#allocation14 + $0xb0] sm:$0xff]
    %v2349 = vld [vmem:[#allocation14 + $0xb8] sm:$0xff]
    %v2350 = vld [vmem:[#allocation14 + $0xc0] sm:$0xff]
    %v2351 = vld [vmem:[#allocation14 + $0xc8] sm:$0xff]
    %v2352 = vld [vmem:[#allocation14 + $0xd0] sm:$0xff]
    %v2353 = vld [vmem:[#allocation14 + $0xd8] sm:$0xff]
    %v2354 = vld [vmem:[#allocation14 + $0xe0] sm:$0xff]
    %v2355 = vld [vmem:[#allocation14 + $0xe8] sm:$0xff]
    %v2356 = vld [vmem:[#allocation14 + $0xf0] sm:$0xff]
    %v2357 = vld [vmem:[#allocation14 + $0xf8] sm:$0xff]
    %v2358 = vld [vmem:[#allocation16] sm:$0x3]
    %v2360 = vlaneseq
    %v2361 = vshrl.u32 %v2360, 7
    %v2362 = vsub.s32 0, %v2361
    %v2363 = vrot.slane %v2358, %v2362
    %v2364 = vlaneseq
    %v2365 = vshrl.u32 %v2364, 7
    %v2366 = vsub.s32 1, %v2365
    %v2367 = vrot.slane %v2358, %v2366
    %v2402 = vunpack.c.l.b16 %v2326
    %v2403 = vunpack.c.h.b16 %v2326
    %v2404 = vunpack.c.l.b16 %v2327
    %v2405 = vunpack.c.h.b16 %v2327
    %v2406 = vunpack.c.l.b16 %v2328
    %v2407 = vunpack.c.h.b16 %v2328
    %v2408 = vunpack.c.l.b16 %v2329
    %v2409 = vunpack.c.h.b16 %v2329
    %v2410 = vunpack.c.l.b16 %v2330
    %v2411 = vunpack.c.h.b16 %v2330
    %v2412 = vunpack.c.l.b16 %v2331
    %v2413 = vunpack.c.h.b16 %v2331
    %v2414 = vunpack.c.l.b16 %v2332
    %v2415 = vunpack.c.h.b16 %v2332
    %v2416 = vunpack.c.l.b16 %v2333
    %v2417 = vunpack.c.h.b16 %v2333
    %v2418 = vunpack.c.l.b16 %v2334
    %v2419 = vunpack.c.h.b16 %v2334
    %v2420 = vunpack.c.l.b16 %v2335
    %v2421 = vunpack.c.h.b16 %v2335
    %v2422 = vunpack.c.l.b16 %v2336
    %v2423 = vunpack.c.h.b16 %v2336
    %v2424 = vunpack.c.l.b16 %v2337
    %v2425 = vunpack.c.h.b16 %v2337
    %v2426 = vunpack.c.l.b16 %v2338
    %v2427 = vunpack.c.h.b16 %v2338
    %v2428 = vunpack.c.l.b16 %v2339
    %v2429 = vunpack.c.h.b16 %v2339
    %v2430 = vunpack.c.l.b16 %v2340
    %v2431 = vunpack.c.h.b16 %v2340
    %v2432 = vunpack.c.l.b16 %v2341
    %v2433 = vunpack.c.h.b16 %v2341
    %v2434 = vunpack.c.l.b16 %v2342
    %v2435 = vunpack.c.h.b16 %v2342
    %v2436 = vunpack.c.l.b16 %v2343
    %v2437 = vunpack.c.h.b16 %v2343
    %v2438 = vunpack.c.l.b16 %v2344
    %v2439 = vunpack.c.h.b16 %v2344
    %v2440 = vunpack.c.l.b16 %v2345
    %v2441 = vunpack.c.h.b16 %v2345
    %v2442 = vunpack.c.l.b16 %v2346
    %v2443 = vunpack.c.h.b16 %v2346
    %v2444 = vunpack.c.l.b16 %v2347
    %v2445 = vunpack.c.h.b16 %v2347
    %v2446 = vunpack.c.l.b16 %v2348
    %v2447 = vunpack.c.h.b16 %v2348
    %v2448 = vunpack.c.l.b16 %v2349
    %v2449 = vunpack.c.h.b16 %v2349
    %v2450 = vunpack.c.l.b16 %v2350
    %v2451 = vunpack.c.h.b16 %v2350
    %v2452 = vunpack.c.l.b16 %v2351
    %v2453 = vunpack.c.h.b16 %v2351
    %v2454 = vunpack.c.l.b16 %v2352
    %v2455 = vunpack.c.h.b16 %v2352
    %v2456 = vunpack.c.l.b16 %v2353
    %v2457 = vunpack.c.h.b16 %v2353
    %v2458 = vunpack.c.l.b16 %v2354
    %v2459 = vunpack.c.h.b16 %v2354
    %v2460 = vunpack.c.l.b16 %v2355
    %v2461 = vunpack.c.h.b16 %v2355
    %v2462 = vunpack.c.l.b16 %v2356
    %v2463 = vunpack.c.h.b16 %v2356
    %v2464 = vunpack.c.l.b16 %v2357
    %v2465 = vunpack.c.h.b16 %v2357
    %v2466 = vpack.c.b16 %v2404, %v2402
    %v2467 = vpack.c.b16 %v2405, %v2403
    %v2468 = vpack.c.b16 %v2408, %v2406
    %v2469 = vpack.c.b16 %v2409, %v2407
    %v2470 = vpack.c.b16 %v2412, %v2410
    %v2471 = vpack.c.b16 %v2413, %v2411
    %v2472 = vpack.c.b16 %v2416, %v2414
    %v2473 = vpack.c.b16 %v2417, %v2415
    %v2474 = vpack.c.b16 %v2420, %v2418
    %v2475 = vpack.c.b16 %v2421, %v2419
    %v2476 = vpack.c.b16 %v2424, %v2422
    %v2477 = vpack.c.b16 %v2425, %v2423
    %v2478 = vpack.c.b16 %v2428, %v2426
    %v2479 = vpack.c.b16 %v2429, %v2427
    %v2480 = vpack.c.b16 %v2432, %v2430
    %v2481 = vpack.c.b16 %v2433, %v2431
    %v2482 = vpack.c.b16 %v2436, %v2434
    %v2483 = vpack.c.b16 %v2437, %v2435
    %v2484 = vpack.c.b16 %v2440, %v2438
    %v2485 = vpack.c.b16 %v2441, %v2439
    %v2486 = vpack.c.b16 %v2444, %v2442
    %v2487 = vpack.c.b16 %v2445, %v2443
    %v2488 = vpack.c.b16 %v2448, %v2446
    %v2489 = vpack.c.b16 %v2449, %v2447
    %v2490 = vpack.c.b16 %v2452, %v2450
    %v2491 = vpack.c.b16 %v2453, %v2451
    %v2492 = vpack.c.b16 %v2456, %v2454
    %v2493 = vpack.c.b16 %v2457, %v2455
    %v2494 = vpack.c.b16 %v2460, %v2458
    %v2495 = vpack.c.b16 %v2461, %v2459
    %v2496 = vpack.c.b16 %v2464, %v2462
    %v2497 = vpack.c.b16 %v2465, %v2463
    %2530 = vmatprep.subr.bf16.mxu0 %v2481
    %2531 = vmatpush1.bf16.msra.mxu0 %v2480
    %2532 = vmatprep.subr.bf16.mxu0 %v2479
    %2533 = vmatpush1.bf16.msra.mxu0 %v2478
    %2534 = vmatprep.subr.bf16.mxu0 %v2477
    %2535 = vmatpush1.bf16.msra.mxu0 %v2476
    %2536 = vmatprep.subr.bf16.mxu0 %v2475
    %2537 = vmatpush1.bf16.msra.mxu0 %v2474
    %2538 = vmatprep.subr.bf16.mxu0 %v2473
    %2539 = vmatpush1.bf16.msra.mxu0 %v2472
    %2540 = vmatprep.subr.bf16.mxu0 %v2471
    %2541 = vmatpush1.bf16.msra.mxu0 %v2470
    %2542 = vmatprep.subr.bf16.mxu0 %v2469
    %2543 = vmatpush1.bf16.msra.mxu0 %v2468
    %2544 = vmatprep.subr.bf16.mxu0 %v2467
    %2545 = vmatpush1.bf16.msra.mxu0 %v2466
    %2546 = vmatprep.subr.bf16.mxu0 %v2497
    %2547 = vmatpush2.bf16.msra.mxu0 %v2496
    %2548 = vmatprep.subr.bf16.mxu0 %v2495
    %2549 = vmatpush2.bf16.msra.mxu0 %v2494
    %2550 = vmatprep.subr.bf16.mxu0 %v2493
    %2551 = vmatpush2.bf16.msra.mxu0 %v2492
    %2552 = vmatprep.subr.bf16.mxu0 %v2491
    %2553 = vmatpush2.bf16.msra.mxu0 %v2490
    %2554 = vmatprep.subr.bf16.mxu0 %v2489
    %2555 = vmatpush2.bf16.msra.mxu0 %v2488
    %2556 = vmatprep.subr.bf16.mxu0 %v2487
    %2557 = vmatpush2.bf16.msra.mxu0 %v2486
    %2558 = vmatprep.subr.bf16.mxu0 %v2485
    %2559 = vmatpush2.bf16.msra.mxu0 %v2484
    %2560 = vmatprep.subr.bf16.mxu0 %v2483
    %2561 = vmatpush2.bf16.msra.mxu0 %v2482
    %2562 = vmatprep.mubr.bf16.mxu0 %v2325
    %2563 = vmatmul.mubr.bf16.gmra.mxu0 %v2324
    %v2564 = vpop.f32.mrf.mxu0
    %v2565 = vadd.f32 %v2363, %v2564
    %v2566 = vpop.f32.mrf.mxu0
    %v2567 = vadd.f32 %v2367, %v2566
    %v2568 = vpop.f32.mrf.mxu0
    %v2569 = vpop.f32.mrf.mxu0
    %2570 = vdwg.mxu0
    %v2573 = vcombine.low %v2565, %v2567
    %v2575 = vunpack.c.l.s4 1983009808
    %v2576 = vunpack.c.0.s8 %v2575
    %v2577 = vlaneseq
    %v2578 = vshrl.u32 %v2577, 7
    %v2579 = vsub.s32 %v2576, %v2578
    %v2580 = vrot.slane %v2573, %v2579
    %2582 = vst [vmem:[#allocation17] sm:$0xf] %v2580
    // Predicated region
    $region66: #{audio_branch_forward.1} parent=1 // pred_check
      _
    $region67: #{audio_branch_forward.1} parent=1 // pred_check_branch
      %2584 = sbr.rel (0) target = $region69
    $region68: #{audio_branch_forward.1} parent=1 // pred_region
      %s2586 = ssub.s32 64, 64
      %2587 = vsyncadd [#allocation7], %s2586
      %s2589 = sshll.u32 [#allocation17], 4
      %s2590 = int_to_ptr.vmem [resolvable:$true] %s2589
      %2592 = dma.vmem_to_hbm [thread:$0]  %s2590, 64, %s9, [#allocation7]
    $region69: #{audio_branch_forward.1} parent=1 // pred_fallthru
      _
    // Predicated region
    $region70: #{audio_branch_forward.1} parent=1 // pred_check
      _
    $region71: #{audio_branch_forward.1} parent=1 // pred_check_branch
      %2594 = sbr.rel (0) target = $region73
    $region72: #{audio_branch_forward.1} parent=1 // pred_region
      %2595 = dma.done [#allocation7], 64
    $region73: #{audio_branch_forward.1} parent=1 // pred_fallthru
      _
    %2596 = vsyncpa [#allocation6], 1
    %2597 = vsyncpa [#allocation9], 1
    %2598 = vsyncpa [#allocation12], 1
    %2599 = vsyncpa [#allocation15], 1
    %2600 = vsyncpa [#allocation7], 1

</llo_original>
